<compile_context>
chip_gen: v7x
topology: tpu7x:2x2x1
jax: 0.10.0
libtpu: 0.0.40
codegen_flags: <defaults>
</compile_context>

<pallas_src>
import jax
import jax.numpy as jnp
import numpy as np
from jax import lax
from jax.experimental import pallas as pl
from jax.experimental.pallas import tpu as pltpu

_BISECT_ITERS = 24          # f32 has a 24-bit mantissa; 24 halvings is ulp-level
_LANE = 128
_TARGET_BLOCK_ELEMS = 512 * 1024   # ~2 MiB f32 of |x| per grid step


def _make_l1proj_kernel(unroll):
    def _l1proj_kernel(rad_ref, x_ref, o_ref):
        # rad_ref: (1, 1) f32 in SMEM ; x_ref/o_ref: (Bt, R, 128) in VMEM.
        z = rad_ref[0, 0]

        # Only |x| (f32) stays live across the bisection loop; the raw f32
        # cast of x is consumed here and the sign is re-read in the epilogue.
        ax = jnp.abs(x_ref[...].astype(jnp.float32))       # (Bt, R, 128)

        # Sublane-axis-first reductions: VALU adds across the R/8 vregs + one
        # sublane reduce, then a single cross-lane (XLU) reduce per row.
        def _rsum(v):
            return jnp.sum(jnp.sum(v, axis=-2, keepdims=True),
                           axis=-1, keepdims=True)          # (Bt, 1, 1)

        def _rmax(v):
            return jnp.max(jnp.max(v, axis=-2, keepdims=True),
                           axis=-1, keepdims=True)           # (Bt, 1, 1)

        l1 = _rsum(ax)                                       # per-row L1 norm
        mx = _rmax(ax)                                       # per-row max |x|
        gap = l1 - z
        n_elems = jnp.float32(ax.shape[-2] * ax.shape[-1])

        # Tightened bracket (valid for rows outside the ball; for rows inside
        # the ball it collapses to [0, 0] so theta == 0 and output == x).
        lo0 = jnp.maximum(jnp.maximum(gap / n_elems, mx - z), 0.0)
        hi0 = jnp.maximum(jnp.minimum(mx, gap), lo0)

        def body(_, carry):
            lo, hi = carry
            mid = 0.5 * (lo + hi)
            s = _rsum(jnp.maximum(ax - mid, 0.0))
            too_small = s > z                    # threshold too small -> raise lo
            return (jnp.where(too_small, mid, lo),
                    jnp.where(too_small, hi, mid))

        lo, hi = lax.fori_loop(0, _BISECT_ITERS, body, (lo0, hi0),
                               unroll=unroll)
        theta = 0.5 * (lo + hi)
        theta = jnp.where(l1 <= z, 0.0, theta)   # inside-ball rows: exact pass-through

        t = jnp.maximum(ax - theta, 0.0)
        o_ref[...] = jnp.where(x_ref[...] < 0, -t, t).astype(o_ref.dtype)

    return _l1proj_kernel


def proj_step(x, rad):
    """Pallas equivalent of ProjStep.forward(x, rad). x: (B, C, H, W)."""
    orig_shape = x.shape
    orig_dtype = x.dtype
    B = int(orig_shape[0])
    N = int(np.prod(orig_shape[1:]))

    xf = x.reshape(B, N)                                    # free row-major reshape
    n_pad = int(-(-N // _LANE) * _LANE)                     # pad only to a lane multiple
    if n_pad != N:
        # TODO(synk): unaligned N still costs a pad + slice HBM pass; an
        # in-kernel tail mask via scalar-prefetched N would remove it.
        xf = jnp.pad(xf, ((0, 0), (0, n_pad - N)))          # zeros are inert
    R = n_pad // _LANE
    x3 = xf.reshape(B, R, _LANE)                            # sublane-dense row slabs

    # Batch packing: largest divisor of B whose block stays ~_TARGET_BLOCK_ELEMS.
    bt_cap = max(1, min(B, _TARGET_BLOCK_ELEMS // (R * _LANE)))
    bt = max(d for d in range(1, bt_cap + 1) if B % d == 0)
    grid = (B // bt,)

    rad_arr = jnp.full((1, 1), rad, dtype=jnp.float32)

    # Explicit VMEM accounting: double-buffered input + output blocks plus the
    # f32 |x| slab live across the loop, clamped to the per-chip capacity.
    itemsize = int(jnp.dtype(orig_dtype).itemsize)
    blk_elems = bt * R * _LANE
    need = blk_elems * (2 * itemsize + 2 * itemsize + 4) + (2 << 20)
    try:
        cap = int(pltpu.get_tpu_info().vmem_capacity_bytes)
    except Exception:
        cap = 64 * 1024 * 1024                              # v7x physical floor
    vmem_limit = int(min(max(need, 32 * 1024 * 1024), cap - (8 << 20)))

    # Fully unroll the 24-pass loop only when a pass touches few vregs.
    unroll = bool(bt * R <= 256)

    out = pl.pallas_call(
        _make_l1proj_kernel(unroll),
        out_shape=jax.ShapeDtypeStruct((B, R, _LANE), orig_dtype),
        grid=grid,
        in_specs=[
            pl.BlockSpec(memory_space=pltpu.MemorySpace.SMEM),    # rad scalar
            pl.BlockSpec((bt, R, _LANE), lambda b: (b, 0, 0)),    # x row slab(s)
        ],
        out_specs=pl.BlockSpec((bt, R, _LANE), lambda b: (b, 0, 0)),
        compiler_params=pltpu.CompilerParams(
            dimension_semantics=("parallel",),                    # megacore-shardable
            vmem_limit_bytes=vmem_limit,
        ),
    )(rad_arr, x3)

    out = out.reshape(B, n_pad)
    if n_pad != N:
        out = out[:, :N]
    return out.reshape(orig_shape)


def _ref_l1proj(x, z):
    """NumPy sort-based reference (Duchi projection), float64."""
    B = x.shape[0]
    xf = np.asarray(x, dtype=np.float64).reshape(B, -1)
    out = xf.copy()
    n = xf.shape[1]
    for b in range(B):
        v = xf[b]
        if np.abs(v).sum() <= z:
            continue
        mu = np.sort(np.abs(v))[::-1]
        cssv = np.cumsum(mu)
        rho = np.nonzero(mu * np.arange(1, n + 1) > (cssv - z))[0][-1]
        theta = (cssv[rho] - z) / (rho + 1.0)
        out[b] = np.sign(v) * np.maximum(np.abs(v) - theta, 0.0)
    return out.reshape(x.shape)


if __name__ == "__main__":
    key = jax.random.PRNGKey(0)
    x = jax.random.normal(key, (2, 4, 16, 16), dtype=jnp.float32)
    rad = 50.0  # radius small enough that the projection is active

    out = jax.block_until_ready(proj_step(x, rad))

    ref = _ref_l1proj(np.asarray(x), rad)
    np.testing.assert_allclose(np.asarray(out), ref, atol=1e-3, rtol=1e-3)
    print("KERNEL_OK")
</pallas_src>

<mosaic_0001>
module attributes {stable_mosaic.version = 11 : i64} {
  func.func @_l1proj_kernel(%arg0: i32, %arg1: memref<1x1xf32, #tpu.memory_space<smem>>, %arg2: memref<2x8x128xf32, #tpu.memory_space<vmem>>, %arg3: memref<2x8x128xf32, #tpu.memory_space<vmem>>) attributes {dimension_semantics = [#tpu.dimension_semantics<parallel>], iteration_bounds = array<i64: 1>, scalar_prefetch = 0 : i64, scratch_operands = 0 : i64, tpu.core_type = #tpu.core_type<tc>, window_params = [{transform_indices = @transform_0, window_bounds = array<i64: 1, 1>}, {transform_indices = @transform_1, window_bounds = array<i64: 2, 8, 128>}, {transform_indices = @transform_2, window_bounds = array<i64: 2, 8, 128>}]} {
    %c0 = arith.constant 0 : index
    %c0_0 = arith.constant 0 : index
    %0 = memref.load %arg1[%c0, %c0_0] : memref<1x1xf32, #tpu.memory_space<smem>>
    %c0_1 = arith.constant 0 : index
    %c0_2 = arith.constant 0 : index
    %c0_3 = arith.constant 0 : index
    %1 = vector.load %arg2[%c0_1, %c0_2, %c0_3] : memref<2x8x128xf32, #tpu.memory_space<vmem>>, vector<2x8x128xf32>
    %2 = math.absf %1 : vector<2x8x128xf32>
    %cst = arith.constant dense<0.000000e+00> : vector<2x128xf32>
    %3 = vector.multi_reduction <add>, %2, %cst [1] : vector<2x8x128xf32> to vector<2x128xf32>
    %4 = vector.shape_cast %3 : vector<2x128xf32> to vector<2x1x128xf32>
    %cst_4 = arith.constant dense<0.000000e+00> : vector<2x1xf32>
    %5 = vector.multi_reduction <add>, %4, %cst_4 [2] : vector<2x1x128xf32> to vector<2x1xf32>
    %6 = vector.shape_cast %5 : vector<2x1xf32> to vector<2x1x1xf32>
    %cst_5 = arith.constant dense<0xFF800000> : vector<2x128xf32>
    %7 = vector.multi_reduction <maximumf>, %2, %cst_5 [1] : vector<2x8x128xf32> to vector<2x128xf32>
    %8 = vector.shape_cast %7 : vector<2x128xf32> to vector<2x1x128xf32>
    %cst_6 = arith.constant dense<0xFF800000> : vector<2x1xf32>
    %9 = vector.multi_reduction <maximumf>, %8, %cst_6 [2] : vector<2x1x128xf32> to vector<2x1xf32>
    %10 = vector.shape_cast %9 : vector<2x1xf32> to vector<2x1x1xf32>
    %11 = vector.broadcast %0 : f32 to vector<2x1x1xf32>
    %12 = arith.subf %6, %11 : vector<2x1x1xf32>
    %cst_7 = arith.constant 1.024000e+03 : f32
    %13 = vector.broadcast %cst_7 : f32 to vector<2x1x1xf32>
    %14 = arith.divf %12, %13 : vector<2x1x1xf32>
    %15 = vector.broadcast %0 : f32 to vector<2x1x1xf32>
    %16 = arith.subf %10, %15 : vector<2x1x1xf32>
    %17 = arith.maximumf %14, %16 : vector<2x1x1xf32>
    %cst_8 = arith.constant 0.000000e+00 : f32
    %18 = vector.broadcast %cst_8 : f32 to vector<2x1x1xf32>
    %19 = arith.maximumf %17, %18 : vector<2x1x1xf32>
    %20 = arith.minimumf %10, %12 : vector<2x1x1xf32>
    %21 = arith.maximumf %20, %19 : vector<2x1x1xf32>
    %c0_i32 = arith.constant 0 : i32
    %22 = arith.addf %19, %21 : vector<2x1x1xf32>
    %cst_9 = arith.constant 5.000000e-01 : f32
    %23 = vector.broadcast %cst_9 : f32 to vector<2x1x1xf32>
    %24 = arith.mulf %23, %22 : vector<2x1x1xf32>
    %25 = vector.broadcast %24 : vector<2x1x1xf32> to vector<2x8x128xf32>
    %26 = arith.subf %2, %25 : vector<2x8x128xf32>
    %cst_10 = arith.constant 0.000000e+00 : f32
    %27 = vector.broadcast %cst_10 : f32 to vector<2x8x128xf32>
    %28 = arith.maximumf %26, %27 : vector<2x8x128xf32>
    %cst_11 = arith.constant dense<0.000000e+00> : vector<2x128xf32>
    %29 = vector.multi_reduction <add>, %28, %cst_11 [1] : vector<2x8x128xf32> to vector<2x128xf32>
    %30 = vector.shape_cast %29 : vector<2x128xf32> to vector<2x1x128xf32>
    %cst_12 = arith.constant dense<0.000000e+00> : vector<2x1xf32>
    %31 = vector.multi_reduction <add>, %30, %cst_12 [2] : vector<2x1x128xf32> to vector<2x1xf32>
    %32 = vector.shape_cast %31 : vector<2x1xf32> to vector<2x1x1xf32>
    %33 = vector.broadcast %0 : f32 to vector<2x1x1xf32>
    %34 = arith.cmpf ogt, %32, %33 : vector<2x1x1xf32>
    %35 = arith.select %34, %24, %19 : vector<2x1x1xi1>, vector<2x1x1xf32>
    %36 = arith.select %34, %21, %24 : vector<2x1x1xi1>, vector<2x1x1xf32>
    %c1_i32 = arith.constant 1 : i32
    %37 = arith.addf %35, %36 : vector<2x1x1xf32>
    %cst_13 = arith.constant 5.000000e-01 : f32
    %38 = vector.broadcast %cst_13 : f32 to vector<2x1x1xf32>
    %39 = arith.mulf %38, %37 : vector<2x1x1xf32>
    %40 = vector.broadcast %39 : vector<2x1x1xf32> to vector<2x8x128xf32>
    %41 = arith.subf %2, %40 : vector<2x8x128xf32>
    %cst_14 = arith.constant 0.000000e+00 : f32
    %42 = vector.broadcast %cst_14 : f32 to vector<2x8x128xf32>
    %43 = arith.maximumf %41, %42 : vector<2x8x128xf32>
    %cst_15 = arith.constant dense<0.000000e+00> : vector<2x128xf32>
    %44 = vector.multi_reduction <add>, %43, %cst_15 [1] : vector<2x8x128xf32> to vector<2x128xf32>
    %45 = vector.shape_cast %44 : vector<2x128xf32> to vector<2x1x128xf32>
    %cst_16 = arith.constant dense<0.000000e+00> : vector<2x1xf32>
    %46 = vector.multi_reduction <add>, %45, %cst_16 [2] : vector<2x1x128xf32> to vector<2x1xf32>
    %47 = vector.shape_cast %46 : vector<2x1xf32> to vector<2x1x1xf32>
    %48 = vector.broadcast %0 : f32 to vector<2x1x1xf32>
    %49 = arith.cmpf ogt, %47, %48 : vector<2x1x1xf32>
    %50 = arith.select %49, %39, %35 : vector<2x1x1xi1>, vector<2x1x1xf32>
    %51 = arith.select %49, %36, %39 : vector<2x1x1xi1>, vector<2x1x1xf32>
    %c2_i32 = arith.constant 2 : i32
    %52 = arith.addf %50, %51 : vector<2x1x1xf32>
    %cst_17 = arith.constant 5.000000e-01 : f32
    %53 = vector.broadcast %cst_17 : f32 to vector<2x1x1xf32>
    %54 = arith.mulf %53, %52 : vector<2x1x1xf32>
    %55 = vector.broadcast %54 : vector<2x1x1xf32> to vector<2x8x128xf32>
    %56 = arith.subf %2, %55 : vector<2x8x128xf32>
    %cst_18 = arith.constant 0.000000e+00 : f32
    %57 = vector.broadcast %cst_18 : f32 to vector<2x8x128xf32>
    %58 = arith.maximumf %56, %57 : vector<2x8x128xf32>
    %cst_19 = arith.constant dense<0.000000e+00> : vector<2x128xf32>
    %59 = vector.multi_reduction <add>, %58, %cst_19 [1] : vector<2x8x128xf32> to vector<2x128xf32>
    %60 = vector.shape_cast %59 : vector<2x128xf32> to vector<2x1x128xf32>
    %cst_20 = arith.constant dense<0.000000e+00> : vector<2x1xf32>
    %61 = vector.multi_reduction <add>, %60, %cst_20 [2] : vector<2x1x128xf32> to vector<2x1xf32>
    %62 = vector.shape_cast %61 : vector<2x1xf32> to vector<2x1x1xf32>
    %63 = vector.broadcast %0 : f32 to vector<2x1x1xf32>
    %64 = arith.cmpf ogt, %62, %63 : vector<2x1x1xf32>
    %65 = arith.select %64, %54, %50 : vector<2x1x1xi1>, vector<2x1x1xf32>
    %66 = arith.select %64, %51, %54 : vector<2x1x1xi1>, vector<2x1x1xf32>
    %c3_i32 = arith.constant 3 : i32
    %67 = arith.addf %65, %66 : vector<2x1x1xf32>
    %cst_21 = arith.constant 5.000000e-01 : f32
    %68 = vector.broadcast %cst_21 : f32 to vector<2x1x1xf32>
    %69 = arith.mulf %68, %67 : vector<2x1x1xf32>
    %70 = vector.broadcast %69 : vector<2x1x1xf32> to vector<2x8x128xf32>
    %71 = arith.subf %2, %70 : vector<2x8x128xf32>
    %cst_22 = arith.constant 0.000000e+00 : f32
    %72 = vector.broadcast %cst_22 : f32 to vector<2x8x128xf32>
    %73 = arith.maximumf %71, %72 : vector<2x8x128xf32>
    %cst_23 = arith.constant dense<0.000000e+00> : vector<2x128xf32>
    %74 = vector.multi_reduction <add>, %73, %cst_23 [1] : vector<2x8x128xf32> to vector<2x128xf32>
    %75 = vector.shape_cast %74 : vector<2x128xf32> to vector<2x1x128xf32>
    %cst_24 = arith.constant dense<0.000000e+00> : vector<2x1xf32>
    %76 = vector.multi_reduction <add>, %75, %cst_24 [2] : vector<2x1x128xf32> to vector<2x1xf32>
    %77 = vector.shape_cast %76 : vector<2x1xf32> to vector<2x1x1xf32>
    %78 = vector.broadcast %0 : f32 to vector<2x1x1xf32>
    %79 = arith.cmpf ogt, %77, %78 : vector<2x1x1xf32>
    %80 = arith.select %79, %69, %65 : vector<2x1x1xi1>, vector<2x1x1xf32>
    %81 = arith.select %79, %66, %69 : vector<2x1x1xi1>, vector<2x1x1xf32>
    %c4_i32 = arith.constant 4 : i32
    %82 = arith.addf %80, %81 : vector<2x1x1xf32>
    %cst_25 = arith.constant 5.000000e-01 : f32
    %83 = vector.broadcast %cst_25 : f32 to vector<2x1x1xf32>
    %84 = arith.mulf %83, %82 : vector<2x1x1xf32>
    %85 = vector.broadcast %84 : vector<2x1x1xf32> to vector<2x8x128xf32>
    %86 = arith.subf %2, %85 : vector<2x8x128xf32>
    %cst_26 = arith.constant 0.000000e+00 : f32
    %87 = vector.broadcast %cst_26 : f32 to vector<2x8x128xf32>
    %88 = arith.maximumf %86, %87 : vector<2x8x128xf32>
    %cst_27 = arith.constant dense<0.000000e+00> : vector<2x128xf32>
    %89 = vector.multi_reduction <add>, %88, %cst_27 [1] : vector<2x8x128xf32> to vector<2x128xf32>
    %90 = vector.shape_cast %89 : vector<2x128xf32> to vector<2x1x128xf32>
    %cst_28 = arith.constant dense<0.000000e+00> : vector<2x1xf32>
    %91 = vector.multi_reduction <add>, %90, %cst_28 [2] : vector<2x1x128xf32> to vector<2x1xf32>
    %92 = vector.shape_cast %91 : vector<2x1xf32> to vector<2x1x1xf32>
    %93 = vector.broadcast %0 : f32 to vector<2x1x1xf32>
    %94 = arith.cmpf ogt, %92, %93 : vector<2x1x1xf32>
    %95 = arith.select %94, %84, %80 : vector<2x1x1xi1>, vector<2x1x1xf32>
    %96 = arith.select %94, %81, %84 : vector<2x1x1xi1>, vector<2x1x1xf32>
    %c5_i32 = arith.constant 5 : i32
    %97 = arith.addf %95, %96 : vector<2x1x1xf32>
    %cst_29 = arith.constant 5.000000e-01 : f32
    %98 = vector.broadcast %cst_29 : f32 to vector<2x1x1xf32>
    %99 = arith.mulf %98, %97 : vector<2x1x1xf32>
    %100 = vector.broadcast %99 : vector<2x1x1xf32> to vector<2x8x128xf32>
    %101 = arith.subf %2, %100 : vector<2x8x128xf32>
    %cst_30 = arith.constant 0.000000e+00 : f32
    %102 = vector.broadcast %cst_30 : f32 to vector<2x8x128xf32>
    %103 = arith.maximumf %101, %102 : vector<2x8x128xf32>
    %cst_31 = arith.constant dense<0.000000e+00> : vector<2x128xf32>
    %104 = vector.multi_reduction <add>, %103, %cst_31 [1] : vector<2x8x128xf32> to vector<2x128xf32>
    %105 = vector.shape_cast %104 : vector<2x128xf32> to vector<2x1x128xf32>
    %cst_32 = arith.constant dense<0.000000e+00> : vector<2x1xf32>
    %106 = vector.multi_reduction <add>, %105, %cst_32 [2] : vector<2x1x128xf32> to vector<2x1xf32>
    %107 = vector.shape_cast %106 : vector<2x1xf32> to vector<2x1x1xf32>
    %108 = vector.broadcast %0 : f32 to vector<2x1x1xf32>
    %109 = arith.cmpf ogt, %107, %108 : vector<2x1x1xf32>
    %110 = arith.select %109, %99, %95 : vector<2x1x1xi1>, vector<2x1x1xf32>
    %111 = arith.select %109, %96, %99 : vector<2x1x1xi1>, vector<2x1x1xf32>
    %c6_i32 = arith.constant 6 : i32
    %112 = arith.addf %110, %111 : vector<2x1x1xf32>
    %cst_33 = arith.constant 5.000000e-01 : f32
    %113 = vector.broadcast %cst_33 : f32 to vector<2x1x1xf32>
    %114 = arith.mulf %113, %112 : vector<2x1x1xf32>
    %115 = vector.broadcast %114 : vector<2x1x1xf32> to vector<2x8x128xf32>
    %116 = arith.subf %2, %115 : vector<2x8x128xf32>
    %cst_34 = arith.constant 0.000000e+00 : f32
    %117 = vector.broadcast %cst_34 : f32 to vector<2x8x128xf32>
    %118 = arith.maximumf %116, %117 : vector<2x8x128xf32>
    %cst_35 = arith.constant dense<0.000000e+00> : vector<2x128xf32>
    %119 = vector.multi_reduction <add>, %118, %cst_35 [1] : vector<2x8x128xf32> to vector<2x128xf32>
    %120 = vector.shape_cast %119 : vector<2x128xf32> to vector<2x1x128xf32>
    %cst_36 = arith.constant dense<0.000000e+00> : vector<2x1xf32>
    %121 = vector.multi_reduction <add>, %120, %cst_36 [2] : vector<2x1x128xf32> to vector<2x1xf32>
    %122 = vector.shape_cast %121 : vector<2x1xf32> to vector<2x1x1xf32>
    %123 = vector.broadcast %0 : f32 to vector<2x1x1xf32>
    %124 = arith.cmpf ogt, %122, %123 : vector<2x1x1xf32>
    %125 = arith.select %124, %114, %110 : vector<2x1x1xi1>, vector<2x1x1xf32>
    %126 = arith.select %124, %111, %114 : vector<2x1x1xi1>, vector<2x1x1xf32>
    %c7_i32 = arith.constant 7 : i32
    %127 = arith.addf %125, %126 : vector<2x1x1xf32>
    %cst_37 = arith.constant 5.000000e-01 : f32
    %128 = vector.broadcast %cst_37 : f32 to vector<2x1x1xf32>
    %129 = arith.mulf %128, %127 : vector<2x1x1xf32>
    %130 = vector.broadcast %129 : vector<2x1x1xf32> to vector<2x8x128xf32>
    %131 = arith.subf %2, %130 : vector<2x8x128xf32>
    %cst_38 = arith.constant 0.000000e+00 : f32
    %132 = vector.broadcast %cst_38 : f32 to vector<2x8x128xf32>
    %133 = arith.maximumf %131, %132 : vector<2x8x128xf32>
    %cst_39 = arith.constant dense<0.000000e+00> : vector<2x128xf32>
    %134 = vector.multi_reduction <add>, %133, %cst_39 [1] : vector<2x8x128xf32> to vector<2x128xf32>
    %135 = vector.shape_cast %134 : vector<2x128xf32> to vector<2x1x128xf32>
    %cst_40 = arith.constant dense<0.000000e+00> : vector<2x1xf32>
    %136 = vector.multi_reduction <add>, %135, %cst_40 [2] : vector<2x1x128xf32> to vector<2x1xf32>
    %137 = vector.shape_cast %136 : vector<2x1xf32> to vector<2x1x1xf32>
    %138 = vector.broadcast %0 : f32 to vector<2x1x1xf32>
    %139 = arith.cmpf ogt, %137, %138 : vector<2x1x1xf32>
    %140 = arith.select %139, %129, %125 : vector<2x1x1xi1>, vector<2x1x1xf32>
    %141 = arith.select %139, %126, %129 : vector<2x1x1xi1>, vector<2x1x1xf32>
    %c8_i32 = arith.constant 8 : i32
    %142 = arith.addf %140, %141 : vector<2x1x1xf32>
    %cst_41 = arith.constant 5.000000e-01 : f32
    %143 = vector.broadcast %cst_41 : f32 to vector<2x1x1xf32>
    %144 = arith.mulf %143, %142 : vector<2x1x1xf32>
    %145 = vector.broadcast %144 : vector<2x1x1xf32> to vector<2x8x128xf32>
    %146 = arith.subf %2, %145 : vector<2x8x128xf32>
    %cst_42 = arith.constant 0.000000e+00 : f32
    %147 = vector.broadcast %cst_42 : f32 to vector<2x8x128xf32>
    %148 = arith.maximumf %146, %147 : vector<2x8x128xf32>
    %cst_43 = arith.constant dense<0.000000e+00> : vector<2x128xf32>
    %149 = vector.multi_reduction <add>, %148, %cst_43 [1] : vector<2x8x128xf32> to vector<2x128xf32>
    %150 = vector.shape_cast %149 : vector<2x128xf32> to vector<2x1x128xf32>
    %cst_44 = arith.constant dense<0.000000e+00> : vector<2x1xf32>
    %151 = vector.multi_reduction <add>, %150, %cst_44 [2] : vector<2x1x128xf32> to vector<2x1xf32>
    %152 = vector.shape_cast %151 : vector<2x1xf32> to vector<2x1x1xf32>
    %153 = vector.broadcast %0 : f32 to vector<2x1x1xf32>
    %154 = arith.cmpf ogt, %152, %153 : vector<2x1x1xf32>
    %155 = arith.select %154, %144, %140 : vector<2x1x1xi1>, vector<2x1x1xf32>
    %156 = arith.select %154, %141, %144 : vector<2x1x1xi1>, vector<2x1x1xf32>
    %c9_i32 = arith.constant 9 : i32
    %157 = arith.addf %155, %156 : vector<2x1x1xf32>
    %cst_45 = arith.constant 5.000000e-01 : f32
    %158 = vector.broadcast %cst_45 : f32 to vector<2x1x1xf32>
    %159 = arith.mulf %158, %157 : vector<2x1x1xf32>
    %160 = vector.broadcast %159 : vector<2x1x1xf32> to vector<2x8x128xf32>
    %161 = arith.subf %2, %160 : vector<2x8x128xf32>
    %cst_46 = arith.constant 0.000000e+00 : f32
    %162 = vector.broadcast %cst_46 : f32 to vector<2x8x128xf32>
    %163 = arith.maximumf %161, %162 : vector<2x8x128xf32>
    %cst_47 = arith.constant dense<0.000000e+00> : vector<2x128xf32>
    %164 = vector.multi_reduction <add>, %163, %cst_47 [1] : vector<2x8x128xf32> to vector<2x128xf32>
    %165 = vector.shape_cast %164 : vector<2x128xf32> to vector<2x1x128xf32>
    %cst_48 = arith.constant dense<0.000000e+00> : vector<2x1xf32>
    %166 = vector.multi_reduction <add>, %165, %cst_48 [2] : vector<2x1x128xf32> to vector<2x1xf32>
    %167 = vector.shape_cast %166 : vector<2x1xf32> to vector<2x1x1xf32>
    %168 = vector.broadcast %0 : f32 to vector<2x1x1xf32>
    %169 = arith.cmpf ogt, %167, %168 : vector<2x1x1xf32>
    %170 = arith.select %169, %159, %155 : vector<2x1x1xi1>, vector<2x1x1xf32>
    %171 = arith.select %169, %156, %159 : vector<2x1x1xi1>, vector<2x1x1xf32>
    %c10_i32 = arith.constant 10 : i32
    %172 = arith.addf %170, %171 : vector<2x1x1xf32>
    %cst_49 = arith.constant 5.000000e-01 : f32
    %173 = vector.broadcast %cst_49 : f32 to vector<2x1x1xf32>
    %174 = arith.mulf %173, %172 : vector<2x1x1xf32>
    %175 = vector.broadcast %174 : vector<2x1x1xf32> to vector<2x8x128xf32>
    %176 = arith.subf %2, %175 : vector<2x8x128xf32>
    %cst_50 = arith.constant 0.000000e+00 : f32
    %177 = vector.broadcast %cst_50 : f32 to vector<2x8x128xf32>
    %178 = arith.maximumf %176, %177 : vector<2x8x128xf32>
    %cst_51 = arith.constant dense<0.000000e+00> : vector<2x128xf32>
    %179 = vector.multi_reduction <add>, %178, %cst_51 [1] : vector<2x8x128xf32> to vector<2x128xf32>
    %180 = vector.shape_cast %179 : vector<2x128xf32> to vector<2x1x128xf32>
    %cst_52 = arith.constant dense<0.000000e+00> : vector<2x1xf32>
    %181 = vector.multi_reduction <add>, %180, %cst_52 [2] : vector<2x1x128xf32> to vector<2x1xf32>
    %182 = vector.shape_cast %181 : vector<2x1xf32> to vector<2x1x1xf32>
    %183 = vector.broadcast %0 : f32 to vector<2x1x1xf32>
    %184 = arith.cmpf ogt, %182, %183 : vector<2x1x1xf32>
    %185 = arith.select %184, %174, %170 : vector<2x1x1xi1>, vector<2x1x1xf32>
    %186 = arith.select %184, %171, %174 : vector<2x1x1xi1>, vector<2x1x1xf32>
    %c11_i32 = arith.constant 11 : i32
    %187 = arith.addf %185, %186 : vector<2x1x1xf32>
    %cst_53 = arith.constant 5.000000e-01 : f32
    %188 = vector.broadcast %cst_53 : f32 to vector<2x1x1xf32>
    %189 = arith.mulf %188, %187 : vector<2x1x1xf32>
    %190 = vector.broadcast %189 : vector<2x1x1xf32> to vector<2x8x128xf32>
    %191 = arith.subf %2, %190 : vector<2x8x128xf32>
    %cst_54 = arith.constant 0.000000e+00 : f32
    %192 = vector.broadcast %cst_54 : f32 to vector<2x8x128xf32>
    %193 = arith.maximumf %191, %192 : vector<2x8x128xf32>
    %cst_55 = arith.constant dense<0.000000e+00> : vector<2x128xf32>
    %194 = vector.multi_reduction <add>, %193, %cst_55 [1] : vector<2x8x128xf32> to vector<2x128xf32>
    %195 = vector.shape_cast %194 : vector<2x128xf32> to vector<2x1x128xf32>
    %cst_56 = arith.constant dense<0.000000e+00> : vector<2x1xf32>
    %196 = vector.multi_reduction <add>, %195, %cst_56 [2] : vector<2x1x128xf32> to vector<2x1xf32>
    %197 = vector.shape_cast %196 : vector<2x1xf32> to vector<2x1x1xf32>
    %198 = vector.broadcast %0 : f32 to vector<2x1x1xf32>
    %199 = arith.cmpf ogt, %197, %198 : vector<2x1x1xf32>
    %200 = arith.select %199, %189, %185 : vector<2x1x1xi1>, vector<2x1x1xf32>
    %201 = arith.select %199, %186, %189 : vector<2x1x1xi1>, vector<2x1x1xf32>
    %c12_i32 = arith.constant 12 : i32
    %202 = arith.addf %200, %201 : vector<2x1x1xf32>
    %cst_57 = arith.constant 5.000000e-01 : f32
    %203 = vector.broadcast %cst_57 : f32 to vector<2x1x1xf32>
    %204 = arith.mulf %203, %202 : vector<2x1x1xf32>
    %205 = vector.broadcast %204 : vector<2x1x1xf32> to vector<2x8x128xf32>
    %206 = arith.subf %2, %205 : vector<2x8x128xf32>
    %cst_58 = arith.constant 0.000000e+00 : f32
    %207 = vector.broadcast %cst_58 : f32 to vector<2x8x128xf32>
    %208 = arith.maximumf %206, %207 : vector<2x8x128xf32>
    %cst_59 = arith.constant dense<0.000000e+00> : vector<2x128xf32>
    %209 = vector.multi_reduction <add>, %208, %cst_59 [1] : vector<2x8x128xf32> to vector<2x128xf32>
    %210 = vector.shape_cast %209 : vector<2x128xf32> to vector<2x1x128xf32>
    %cst_60 = arith.constant dense<0.000000e+00> : vector<2x1xf32>
    %211 = vector.multi_reduction <add>, %210, %cst_60 [2] : vector<2x1x128xf32> to vector<2x1xf32>
    %212 = vector.shape_cast %211 : vector<2x1xf32> to vector<2x1x1xf32>
    %213 = vector.broadcast %0 : f32 to vector<2x1x1xf32>
    %214 = arith.cmpf ogt, %212, %213 : vector<2x1x1xf32>
    %215 = arith.select %214, %204, %200 : vector<2x1x1xi1>, vector<2x1x1xf32>
    %216 = arith.select %214, %201, %204 : vector<2x1x1xi1>, vector<2x1x1xf32>
    %c13_i32 = arith.constant 13 : i32
    %217 = arith.addf %215, %216 : vector<2x1x1xf32>
    %cst_61 = arith.constant 5.000000e-01 : f32
    %218 = vector.broadcast %cst_61 : f32 to vector<2x1x1xf32>
    %219 = arith.mulf %218, %217 : vector<2x1x1xf32>
    %220 = vector.broadcast %219 : vector<2x1x1xf32> to vector<2x8x128xf32>
    %221 = arith.subf %2, %220 : vector<2x8x128xf32>
    %cst_62 = arith.constant 0.000000e+00 : f32
    %222 = vector.broadcast %cst_62 : f32 to vector<2x8x128xf32>
    %223 = arith.maximumf %221, %222 : vector<2x8x128xf32>
    %cst_63 = arith.constant dense<0.000000e+00> : vector<2x128xf32>
    %224 = vector.multi_reduction <add>, %223, %cst_63 [1] : vector<2x8x128xf32> to vector<2x128xf32>
    %225 = vector.shape_cast %224 : vector<2x128xf32> to vector<2x1x128xf32>
    %cst_64 = arith.constant dense<0.000000e+00> : vector<2x1xf32>
    %226 = vector.multi_reduction <add>, %225, %cst_64 [2] : vector<2x1x128xf32> to vector<2x1xf32>
    %227 = vector.shape_cast %226 : vector<2x1xf32> to vector<2x1x1xf32>
    %228 = vector.broadcast %0 : f32 to vector<2x1x1xf32>
    %229 = arith.cmpf ogt, %227, %228 : vector<2x1x1xf32>
    %230 = arith.select %229, %219, %215 : vector<2x1x1xi1>, vector<2x1x1xf32>
    %231 = arith.select %229, %216, %219 : vector<2x1x1xi1>, vector<2x1x1xf32>
    %c14_i32 = arith.constant 14 : i32
    %232 = arith.addf %230, %231 : vector<2x1x1xf32>
    %cst_65 = arith.constant 5.000000e-01 : f32
    %233 = vector.broadcast %cst_65 : f32 to vector<2x1x1xf32>
    %234 = arith.mulf %233, %232 : vector<2x1x1xf32>
    %235 = vector.broadcast %234 : vector<2x1x1xf32> to vector<2x8x128xf32>
    %236 = arith.subf %2, %235 : vector<2x8x128xf32>
    %cst_66 = arith.constant 0.000000e+00 : f32
    %237 = vector.broadcast %cst_66 : f32 to vector<2x8x128xf32>
    %238 = arith.maximumf %236, %237 : vector<2x8x128xf32>
    %cst_67 = arith.constant dense<0.000000e+00> : vector<2x128xf32>
    %239 = vector.multi_reduction <add>, %238, %cst_67 [1] : vector<2x8x128xf32> to vector<2x128xf32>
    %240 = vector.shape_cast %239 : vector<2x128xf32> to vector<2x1x128xf32>
    %cst_68 = arith.constant dense<0.000000e+00> : vector<2x1xf32>
    %241 = vector.multi_reduction <add>, %240, %cst_68 [2] : vector<2x1x128xf32> to vector<2x1xf32>
    %242 = vector.shape_cast %241 : vector<2x1xf32> to vector<2x1x1xf32>
    %243 = vector.broadcast %0 : f32 to vector<2x1x1xf32>
    %244 = arith.cmpf ogt, %242, %243 : vector<2x1x1xf32>
    %245 = arith.select %244, %234, %230 : vector<2x1x1xi1>, vector<2x1x1xf32>
    %246 = arith.select %244, %231, %234 : vector<2x1x1xi1>, vector<2x1x1xf32>
    %c15_i32 = arith.constant 15 : i32
    %247 = arith.addf %245, %246 : vector<2x1x1xf32>
    %cst_69 = arith.constant 5.000000e-01 : f32
    %248 = vector.broadcast %cst_69 : f32 to vector<2x1x1xf32>
    %249 = arith.mulf %248, %247 : vector<2x1x1xf32>
    %250 = vector.broadcast %249 : vector<2x1x1xf32> to vector<2x8x128xf32>
    %251 = arith.subf %2, %250 : vector<2x8x128xf32>
    %cst_70 = arith.constant 0.000000e+00 : f32
    %252 = vector.broadcast %cst_70 : f32 to vector<2x8x128xf32>
    %253 = arith.maximumf %251, %252 : vector<2x8x128xf32>
    %cst_71 = arith.constant dense<0.000000e+00> : vector<2x128xf32>
    %254 = vector.multi_reduction <add>, %253, %cst_71 [1] : vector<2x8x128xf32> to vector<2x128xf32>
    %255 = vector.shape_cast %254 : vector<2x128xf32> to vector<2x1x128xf32>
    %cst_72 = arith.constant dense<0.000000e+00> : vector<2x1xf32>
    %256 = vector.multi_reduction <add>, %255, %cst_72 [2] : vector<2x1x128xf32> to vector<2x1xf32>
    %257 = vector.shape_cast %256 : vector<2x1xf32> to vector<2x1x1xf32>
    %258 = vector.broadcast %0 : f32 to vector<2x1x1xf32>
    %259 = arith.cmpf ogt, %257, %258 : vector<2x1x1xf32>
    %260 = arith.select %259, %249, %245 : vector<2x1x1xi1>, vector<2x1x1xf32>
    %261 = arith.select %259, %246, %249 : vector<2x1x1xi1>, vector<2x1x1xf32>
    %c16_i32 = arith.constant 16 : i32
    %262 = arith.addf %260, %261 : vector<2x1x1xf32>
    %cst_73 = arith.constant 5.000000e-01 : f32
    %263 = vector.broadcast %cst_73 : f32 to vector<2x1x1xf32>
    %264 = arith.mulf %263, %262 : vector<2x1x1xf32>
    %265 = vector.broadcast %264 : vector<2x1x1xf32> to vector<2x8x128xf32>
    %266 = arith.subf %2, %265 : vector<2x8x128xf32>
    %cst_74 = arith.constant 0.000000e+00 : f32
    %267 = vector.broadcast %cst_74 : f32 to vector<2x8x128xf32>
    %268 = arith.maximumf %266, %267 : vector<2x8x128xf32>
    %cst_75 = arith.constant dense<0.000000e+00> : vector<2x128xf32>
    %269 = vector.multi_reduction <add>, %268, %cst_75 [1] : vector<2x8x128xf32> to vector<2x128xf32>
    %270 = vector.shape_cast %269 : vector<2x128xf32> to vector<2x1x128xf32>
    %cst_76 = arith.constant dense<0.000000e+00> : vector<2x1xf32>
    %271 = vector.multi_reduction <add>, %270, %cst_76 [2] : vector<2x1x128xf32> to vector<2x1xf32>
    %272 = vector.shape_cast %271 : vector<2x1xf32> to vector<2x1x1xf32>
    %273 = vector.broadcast %0 : f32 to vector<2x1x1xf32>
    %274 = arith.cmpf ogt, %272, %273 : vector<2x1x1xf32>
    %275 = arith.select %274, %264, %260 : vector<2x1x1xi1>, vector<2x1x1xf32>
    %276 = arith.select %274, %261, %264 : vector<2x1x1xi1>, vector<2x1x1xf32>
    %c17_i32 = arith.constant 17 : i32
    %277 = arith.addf %275, %276 : vector<2x1x1xf32>
    %cst_77 = arith.constant 5.000000e-01 : f32
    %278 = vector.broadcast %cst_77 : f32 to vector<2x1x1xf32>
    %279 = arith.mulf %278, %277 : vector<2x1x1xf32>
    %280 = vector.broadcast %279 : vector<2x1x1xf32> to vector<2x8x128xf32>
    %281 = arith.subf %2, %280 : vector<2x8x128xf32>
    %cst_78 = arith.constant 0.000000e+00 : f32
    %282 = vector.broadcast %cst_78 : f32 to vector<2x8x128xf32>
    %283 = arith.maximumf %281, %282 : vector<2x8x128xf32>
    %cst_79 = arith.constant dense<0.000000e+00> : vector<2x128xf32>
    %284 = vector.multi_reduction <add>, %283, %cst_79 [1] : vector<2x8x128xf32> to vector<2x128xf32>
    %285 = vector.shape_cast %284 : vector<2x128xf32> to vector<2x1x128xf32>
    %cst_80 = arith.constant dense<0.000000e+00> : vector<2x1xf32>
    %286 = vector.multi_reduction <add>, %285, %cst_80 [2] : vector<2x1x128xf32> to vector<2x1xf32>
    %287 = vector.shape_cast %286 : vector<2x1xf32> to vector<2x1x1xf32>
    %288 = vector.broadcast %0 : f32 to vector<2x1x1xf32>
    %289 = arith.cmpf ogt, %287, %288 : vector<2x1x1xf32>
    %290 = arith.select %289, %279, %275 : vector<2x1x1xi1>, vector<2x1x1xf32>
    %291 = arith.select %289, %276, %279 : vector<2x1x1xi1>, vector<2x1x1xf32>
    %c18_i32 = arith.constant 18 : i32
    %292 = arith.addf %290, %291 : vector<2x1x1xf32>
    %cst_81 = arith.constant 5.000000e-01 : f32
    %293 = vector.broadcast %cst_81 : f32 to vector<2x1x1xf32>
    %294 = arith.mulf %293, %292 : vector<2x1x1xf32>
    %295 = vector.broadcast %294 : vector<2x1x1xf32> to vector<2x8x128xf32>
    %296 = arith.subf %2, %295 : vector<2x8x128xf32>
    %cst_82 = arith.constant 0.000000e+00 : f32
    %297 = vector.broadcast %cst_82 : f32 to vector<2x8x128xf32>
    %298 = arith.maximumf %296, %297 : vector<2x8x128xf32>
    %cst_83 = arith.constant dense<0.000000e+00> : vector<2x128xf32>
    %299 = vector.multi_reduction <add>, %298, %cst_83 [1] : vector<2x8x128xf32> to vector<2x128xf32>
    %300 = vector.shape_cast %299 : vector<2x128xf32> to vector<2x1x128xf32>
    %cst_84 = arith.constant dense<0.000000e+00> : vector<2x1xf32>
    %301 = vector.multi_reduction <add>, %300, %cst_84 [2] : vector<2x1x128xf32> to vector<2x1xf32>
    %302 = vector.shape_cast %301 : vector<2x1xf32> to vector<2x1x1xf32>
    %303 = vector.broadcast %0 : f32 to vector<2x1x1xf32>
    %304 = arith.cmpf ogt, %302, %303 : vector<2x1x1xf32>
    %305 = arith.select %304, %294, %290 : vector<2x1x1xi1>, vector<2x1x1xf32>
    %306 = arith.select %304, %291, %294 : vector<2x1x1xi1>, vector<2x1x1xf32>
    %c19_i32 = arith.constant 19 : i32
    %307 = arith.addf %305, %306 : vector<2x1x1xf32>
    %cst_85 = arith.constant 5.000000e-01 : f32
    %308 = vector.broadcast %cst_85 : f32 to vector<2x1x1xf32>
    %309 = arith.mulf %308, %307 : vector<2x1x1xf32>
    %310 = vector.broadcast %309 : vector<2x1x1xf32> to vector<2x8x128xf32>
    %311 = arith.subf %2, %310 : vector<2x8x128xf32>
    %cst_86 = arith.constant 0.000000e+00 : f32
    %312 = vector.broadcast %cst_86 : f32 to vector<2x8x128xf32>
    %313 = arith.maximumf %311, %312 : vector<2x8x128xf32>
    %cst_87 = arith.constant dense<0.000000e+00> : vector<2x128xf32>
    %314 = vector.multi_reduction <add>, %313, %cst_87 [1] : vector<2x8x128xf32> to vector<2x128xf32>
    %315 = vector.shape_cast %314 : vector<2x128xf32> to vector<2x1x128xf32>
    %cst_88 = arith.constant dense<0.000000e+00> : vector<2x1xf32>
    %316 = vector.multi_reduction <add>, %315, %cst_88 [2] : vector<2x1x128xf32> to vector<2x1xf32>
    %317 = vector.shape_cast %316 : vector<2x1xf32> to vector<2x1x1xf32>
    %318 = vector.broadcast %0 : f32 to vector<2x1x1xf32>
    %319 = arith.cmpf ogt, %317, %318 : vector<2x1x1xf32>
    %320 = arith.select %319, %309, %305 : vector<2x1x1xi1>, vector<2x1x1xf32>
    %321 = arith.select %319, %306, %309 : vector<2x1x1xi1>, vector<2x1x1xf32>
    %c20_i32 = arith.constant 20 : i32
    %322 = arith.addf %320, %321 : vector<2x1x1xf32>
    %cst_89 = arith.constant 5.000000e-01 : f32
    %323 = vector.broadcast %cst_89 : f32 to vector<2x1x1xf32>
    %324 = arith.mulf %323, %322 : vector<2x1x1xf32>
    %325 = vector.broadcast %324 : vector<2x1x1xf32> to vector<2x8x128xf32>
    %326 = arith.subf %2, %325 : vector<2x8x128xf32>
    %cst_90 = arith.constant 0.000000e+00 : f32
    %327 = vector.broadcast %cst_90 : f32 to vector<2x8x128xf32>
    %328 = arith.maximumf %326, %327 : vector<2x8x128xf32>
    %cst_91 = arith.constant dense<0.000000e+00> : vector<2x128xf32>
    %329 = vector.multi_reduction <add>, %328, %cst_91 [1] : vector<2x8x128xf32> to vector<2x128xf32>
    %330 = vector.shape_cast %329 : vector<2x128xf32> to vector<2x1x128xf32>
    %cst_92 = arith.constant dense<0.000000e+00> : vector<2x1xf32>
    %331 = vector.multi_reduction <add>, %330, %cst_92 [2] : vector<2x1x128xf32> to vector<2x1xf32>
    %332 = vector.shape_cast %331 : vector<2x1xf32> to vector<2x1x1xf32>
    %333 = vector.broadcast %0 : f32 to vector<2x1x1xf32>
    %334 = arith.cmpf ogt, %332, %333 : vector<2x1x1xf32>
    %335 = arith.select %334, %324, %320 : vector<2x1x1xi1>, vector<2x1x1xf32>
    %336 = arith.select %334, %321, %324 : vector<2x1x1xi1>, vector<2x1x1xf32>
    %c21_i32 = arith.constant 21 : i32
    %337 = arith.addf %335, %336 : vector<2x1x1xf32>
    %cst_93 = arith.constant 5.000000e-01 : f32
    %338 = vector.broadcast %cst_93 : f32 to vector<2x1x1xf32>
    %339 = arith.mulf %338, %337 : vector<2x1x1xf32>
    %340 = vector.broadcast %339 : vector<2x1x1xf32> to vector<2x8x128xf32>
    %341 = arith.subf %2, %340 : vector<2x8x128xf32>
    %cst_94 = arith.constant 0.000000e+00 : f32
    %342 = vector.broadcast %cst_94 : f32 to vector<2x8x128xf32>
    %343 = arith.maximumf %341, %342 : vector<2x8x128xf32>
    %cst_95 = arith.constant dense<0.000000e+00> : vector<2x128xf32>
    %344 = vector.multi_reduction <add>, %343, %cst_95 [1] : vector<2x8x128xf32> to vector<2x128xf32>
    %345 = vector.shape_cast %344 : vector<2x128xf32> to vector<2x1x128xf32>
    %cst_96 = arith.constant dense<0.000000e+00> : vector<2x1xf32>
    %346 = vector.multi_reduction <add>, %345, %cst_96 [2] : vector<2x1x128xf32> to vector<2x1xf32>
    %347 = vector.shape_cast %346 : vector<2x1xf32> to vector<2x1x1xf32>
    %348 = vector.broadcast %0 : f32 to vector<2x1x1xf32>
    %349 = arith.cmpf ogt, %347, %348 : vector<2x1x1xf32>
    %350 = arith.select %349, %339, %335 : vector<2x1x1xi1>, vector<2x1x1xf32>
    %351 = arith.select %349, %336, %339 : vector<2x1x1xi1>, vector<2x1x1xf32>
    %c22_i32 = arith.constant 22 : i32
    %352 = arith.addf %350, %351 : vector<2x1x1xf32>
    %cst_97 = arith.constant 5.000000e-01 : f32
    %353 = vector.broadcast %cst_97 : f32 to vector<2x1x1xf32>
    %354 = arith.mulf %353, %352 : vector<2x1x1xf32>
    %355 = vector.broadcast %354 : vector<2x1x1xf32> to vector<2x8x128xf32>
    %356 = arith.subf %2, %355 : vector<2x8x128xf32>
    %cst_98 = arith.constant 0.000000e+00 : f32
    %357 = vector.broadcast %cst_98 : f32 to vector<2x8x128xf32>
    %358 = arith.maximumf %356, %357 : vector<2x8x128xf32>
    %cst_99 = arith.constant dense<0.000000e+00> : vector<2x128xf32>
    %359 = vector.multi_reduction <add>, %358, %cst_99 [1] : vector<2x8x128xf32> to vector<2x128xf32>
    %360 = vector.shape_cast %359 : vector<2x128xf32> to vector<2x1x128xf32>
    %cst_100 = arith.constant dense<0.000000e+00> : vector<2x1xf32>
    %361 = vector.multi_reduction <add>, %360, %cst_100 [2] : vector<2x1x128xf32> to vector<2x1xf32>
    %362 = vector.shape_cast %361 : vector<2x1xf32> to vector<2x1x1xf32>
    %363 = vector.broadcast %0 : f32 to vector<2x1x1xf32>
    %364 = arith.cmpf ogt, %362, %363 : vector<2x1x1xf32>
    %365 = arith.select %364, %354, %350 : vector<2x1x1xi1>, vector<2x1x1xf32>
    %366 = arith.select %364, %351, %354 : vector<2x1x1xi1>, vector<2x1x1xf32>
    %c23_i32 = arith.constant 23 : i32
    %367 = arith.addf %365, %366 : vector<2x1x1xf32>
    %cst_101 = arith.constant 5.000000e-01 : f32
    %368 = vector.broadcast %cst_101 : f32 to vector<2x1x1xf32>
    %369 = arith.mulf %368, %367 : vector<2x1x1xf32>
    %370 = vector.broadcast %369 : vector<2x1x1xf32> to vector<2x8x128xf32>
    %371 = arith.subf %2, %370 : vector<2x8x128xf32>
    %cst_102 = arith.constant 0.000000e+00 : f32
    %372 = vector.broadcast %cst_102 : f32 to vector<2x8x128xf32>
    %373 = arith.maximumf %371, %372 : vector<2x8x128xf32>
    %cst_103 = arith.constant dense<0.000000e+00> : vector<2x128xf32>
    %374 = vector.multi_reduction <add>, %373, %cst_103 [1] : vector<2x8x128xf32> to vector<2x128xf32>
    %375 = vector.shape_cast %374 : vector<2x128xf32> to vector<2x1x128xf32>
    %cst_104 = arith.constant dense<0.000000e+00> : vector<2x1xf32>
    %376 = vector.multi_reduction <add>, %375, %cst_104 [2] : vector<2x1x128xf32> to vector<2x1xf32>
    %377 = vector.shape_cast %376 : vector<2x1xf32> to vector<2x1x1xf32>
    %378 = vector.broadcast %0 : f32 to vector<2x1x1xf32>
    %379 = arith.cmpf ogt, %377, %378 : vector<2x1x1xf32>
    %380 = arith.select %379, %369, %365 : vector<2x1x1xi1>, vector<2x1x1xf32>
    %381 = arith.select %379, %366, %369 : vector<2x1x1xi1>, vector<2x1x1xf32>
    %382 = arith.addf %380, %381 : vector<2x1x1xf32>
    %cst_105 = arith.constant 5.000000e-01 : f32
    %383 = vector.broadcast %cst_105 : f32 to vector<2x1x1xf32>
    %384 = arith.mulf %383, %382 : vector<2x1x1xf32>
    %385 = vector.broadcast %0 : f32 to vector<2x1x1xf32>
    %386 = arith.cmpf ole, %6, %385 : vector<2x1x1xf32>
    %cst_106 = arith.constant 0.000000e+00 : f32
    %387 = vector.broadcast %cst_106 : f32 to vector<2x1x1xf32>
    %388 = arith.select %386, %387, %384 : vector<2x1x1xi1>, vector<2x1x1xf32>
    %389 = vector.broadcast %388 : vector<2x1x1xf32> to vector<2x8x128xf32>
    %390 = arith.subf %2, %389 : vector<2x8x128xf32>
    %cst_107 = arith.constant 0.000000e+00 : f32
    %391 = vector.broadcast %cst_107 : f32 to vector<2x8x128xf32>
    %392 = arith.maximumf %390, %391 : vector<2x8x128xf32>
    %c0_108 = arith.constant 0 : index
    %c0_109 = arith.constant 0 : index
    %c0_110 = arith.constant 0 : index
    %393 = vector.load %arg2[%c0_108, %c0_109, %c0_110] : memref<2x8x128xf32, #tpu.memory_space<vmem>>, vector<2x8x128xf32>
    %cst_111 = arith.constant 0.000000e+00 : f32
    %394 = vector.broadcast %cst_111 : f32 to vector<2x8x128xf32>
    %395 = arith.cmpf olt, %393, %394 : vector<2x8x128xf32>
    %cst_112 = arith.constant 0.000000e+00 : f32
    %396 = vector.broadcast %cst_112 : f32 to vector<2x8x128xf32>
    %397 = arith.subf %396, %392 : vector<2x8x128xf32>
    %398 = arith.select %395, %397, %392 : vector<2x8x128xi1>, vector<2x8x128xf32>
    %c0_113 = arith.constant 0 : index
    %c0_114 = arith.constant 0 : index
    %c0_115 = arith.constant 0 : index
    %399 = vector.load %arg3[%c0_113, %c0_114, %c0_115] : memref<2x8x128xf32, #tpu.memory_space<vmem>>, vector<2x8x128xf32>
    tpu.vector_store %arg3[%c0_113, %c0_114, %c0_115], %398 {strides = array<i32>} : memref<2x8x128xf32, #tpu.memory_space<vmem>>, vector<2x8x128xf32>,
    return
  }
  func.func @transform_0(%arg0: i32) -> (i32, i32) {
    %c0_i32 = arith.constant 0 : i32
    %c0_i32_0 = arith.constant 0 : i32
    %c0_i32_1 = arith.constant 0 : i32
    return %c0_i32, %c0_i32_0 : i32, i32
  }
  func.func @transform_1(%arg0: i32) -> (i32, i32, i32) {
    %c0_i32 = arith.constant 0 : i32
    %c0_i32_0 = arith.constant 0 : i32
    %c0_i32_1 = arith.constant 0 : i32
    return %arg0, %c0_i32, %c0_i32_0 : i32, i32, i32
  }
  func.func @transform_2(%arg0: i32) -> (i32, i32, i32) {
    %c0_i32 = arith.constant 0 : i32
    %c0_i32_0 = arith.constant 0 : i32
    %c0_i32_1 = arith.constant 0 : i32
    return %arg0, %c0_i32, %c0_i32_0 : i32, i32, i32
  }
}

</mosaic_0001>

<llo_original>
// kernel: tpu_custom_call.1
$region0: #{tpu_custom_call.1}
  #allocation0 [shape = 'u32[]', space=smem, size = 0x4, offset = 0x4, fixed_abs, tag = 'smem constant byte address 0x4 - core index']
  #allocation1 [shape = 'u32[144,128]{1,0:T(1,128)}', space=vmem, size = 0x12000, scoped, tag = 'internal scratch']
  #allocation2 [shape = 'f32[1,1]{1,0:T(1,128)S(6)}', space=smem, size = 0x200, scoped, tag = 'scoped memory for tpu_custom_call.1']
  %s0 = inlined_call_operand.<no memory space> [shape: f32[1,1], index: 0, kind: input, shape index: {}]
  %s1 = inlined_call_operand.hbm [shape: f32[2,8,128], index: 1, kind: input, shape index: {}]
  %s2 = inlined_call_operand.hbm [shape: f32[2,8,128], index: 2, kind: output, shape index: {}]
  %s3 = sld [smem:[#allocation0]]
  $region22: #{tpu_custom_call.1} parent=0
    _
  %s5 = ssub.s32 1, %s3
  %s6 = scalar_select 0, %s5, %s3
  %7 = sst [smem:[#allocation2]] %s0
  $region1: #{tpu_custom_call.1} parent=0
    #allocation3 [shape = 'u8[8192]{0}', space=vmem, size = 0x2000, scoped, tag = 'input window, operand 1, single buffered']
    #allocation4 [shape = 's32[1]{0}', space=sflag, size = 0x4, scoped, tag = 'scoped memory for tpu_custom_call.1']
    #allocation5 [shape = 's32[1]{0}', space=sflag, size = 0x4, scoped, tag = 'scoped memory for tpu_custom_call.1']
    #allocation6 [shape = 'u8[8192]{0}', space=vmem, size = 0x2000, scoped, tag = 'output window, operand 0, single buffered']
    %8 = vsyncpa [#allocation4], 0
    %9 = vsyncpa [#allocation5], 0
    // Predicated region
    $region2: #{tpu_custom_call.1} parent=1 // pred_check
      _
    $region3: #{tpu_custom_call.1} parent=1 // pred_check_branch
      %11 = sbr.rel (0) target = $region5
    $region4: #{tpu_custom_call.1} parent=1 // pred_region
      _
    $region5: #{tpu_custom_call.1} parent=1 // pred_fallthru
      _
    // Predicated region
    $region6: #{tpu_custom_call.1} parent=1 // pred_check
      _
    $region7: #{tpu_custom_call.1} parent=1 // pred_check_branch
      %13 = sbr.rel (0) target = $region9
    $region8: #{tpu_custom_call.1} parent=1 // pred_region
      %s15 = ssub.s32 256, 256
      %16 = vsyncadd [#allocation4], %s15
      %s17 = sshll.u32 [#allocation3], 4
      %s18 = int_to_ptr.vmem [resolvable:$true] %s17
      %23 = dma.hbm_to_vmem [thread:$0]  %s1, 256, %s18, [#allocation4], 128, 128, 8
    $region9: #{tpu_custom_call.1} parent=1 // pred_fallthru
      _
    // Predicated region
    $region10: #{tpu_custom_call.1} parent=1 // pred_check
      _
    $region11: #{tpu_custom_call.1} parent=1 // pred_check_branch
      %25 = sbr.rel (0) target = $region13
    $region12: #{tpu_custom_call.1} parent=1 // pred_region
      %26 = dma.done [#allocation4], 256
    $region13: #{tpu_custom_call.1} parent=1 // pred_fallthru
      _
    %s27 = sld [smem:[#allocation2]]
    %v28 = vld [vmem:[#allocation3] sm:$0xff]
    %v29 = vld [vmem:[#allocation3 + $0x8] sm:$0xff]
    %v30 = vand.u32 2147483647, %v28
    %v31 = vand.u32 2147483647, %v29
    %v32 = vrot.slane %v30, 4
    %v33 = vadd.f32 %v30, %v32
    %v34 = vrot.slane %v33, 2
    %v35 = vadd.f32 %v33, %v34
    %v36 = vrot.slane %v35, 1
    %v37 = vadd.f32 %v35, %v36
    %v38 = vrot.slane %v31, 4
    %v39 = vadd.f32 %v31, %v38
    %v40 = vrot.slane %v39, 2
    %v41 = vadd.f32 %v39, %v40
    %v42 = vrot.slane %v41, 1
    %v43 = vadd.f32 %v41, %v42
    %44 = vadd.xlane.f32.xlu0 %v37
    %v45 = vpop.xlane.xlu0 %44
    %46 = vadd.xlane.f32.xlu0 %v43
    %v47 = vpop.xlane.xlu0 %46
    %v48 = vrot.slane %v30, 4
    %v49 = vmax.f32 %v30, %v48
    %v50 = vrot.slane %v49, 2
    %v51 = vmax.f32 %v49, %v50
    %v52 = vrot.slane %v51, 1
    %v53 = vmax.f32 %v51, %v52
    %v54 = vrot.slane %v31, 4
    %v55 = vmax.f32 %v31, %v54
    %v56 = vrot.slane %v55, 2
    %v57 = vmax.f32 %v55, %v56
    %v58 = vrot.slane %v57, 1
    %v59 = vmax.f32 %v57, %v58
    %60 = vmax.xlane.f32.xlu0 %v53
    %v61 = vpop.xlane.xlu0 %60
    %62 = vmax.xlane.f32.xlu0 %v59
    %v63 = vpop.xlane.xlu0 %62
    %v64 = vstv %s27
    %v65 = vsub.f32 %v45, %v64
    %v66 = vsub.f32 %v47, %v64
    %v67 = vrcp.pop 1024.0
    %v68 = vmul.f32 %v65, %v67
    %v69 = vmul.f32 %v66, %v67
    %v70 = vsub.f32 %v61, %v64
    %v71 = vsub.f32 %v63, %v64
    %v72 = vmax.f32 %v68, %v70
    %v73 = vmax.f32 %v69, %v71
    %v74 = vmax.f32 %v72, 0.0
    %v75 = vmax.f32 %v73, 0.0
    %v76 = vmin.f32 %v61, %v65
    %v77 = vmin.f32 %v63, %v66
    %v78 = vmax.f32 %v76, %v74
    %v79 = vmax.f32 %v77, %v75
    %v80 = vadd.f32 %v74, %v78
    %v81 = vadd.f32 %v75, %v79
    %v82 = vmul.f32 %v80, 0.5
    %v83 = vmul.f32 %v81, 0.5
    %v84 = vsub.f32 %v30, %v82
    %v85 = vsub.f32 %v31, %v83
    %v86 = vmax.f32 %v84, 0.0
    %v87 = vmax.f32 %v85, 0.0
    %v88 = vrot.slane %v86, 4
    %v89 = vadd.f32 %v86, %v88
    %v90 = vrot.slane %v89, 2
    %v91 = vadd.f32 %v89, %v90
    %v92 = vrot.slane %v91, 1
    %v93 = vadd.f32 %v91, %v92
    %v94 = vrot.slane %v87, 4
    %v95 = vadd.f32 %v87, %v94
    %v96 = vrot.slane %v95, 2
    %v97 = vadd.f32 %v95, %v96
    %v98 = vrot.slane %v97, 1
    %v99 = vadd.f32 %v97, %v98
    %100 = vadd.xlane.f32.xlu0 %v93
    %v101 = vpop.xlane.xlu0 %100
    %102 = vadd.xlane.f32.xlu0 %v99
    %v103 = vpop.xlane.xlu0 %102
    %vm104 = vcmp.gt.f32.partialorder %v101, %v64
    %vm105 = vcmp.gt.f32.partialorder %v103, %v64
    %v106 = vsel %vm104, %v82, %v74
    %v107 = vsel %vm105, %v83, %v75
    %v108 = vsel %vm104, %v78, %v82
    %v109 = vsel %vm105, %v79, %v83
    %v110 = vadd.f32 %v106, %v108
    %v111 = vadd.f32 %v107, %v109
    %v112 = vmul.f32 %v110, 0.5
    %v113 = vmul.f32 %v111, 0.5
    %v114 = vsub.f32 %v30, %v112
    %v115 = vsub.f32 %v31, %v113
    %v116 = vmax.f32 %v114, 0.0
    %v117 = vmax.f32 %v115, 0.0
    %v118 = vrot.slane %v116, 4
    %v119 = vadd.f32 %v116, %v118
    %v120 = vrot.slane %v119, 2
    %v121 = vadd.f32 %v119, %v120
    %v122 = vrot.slane %v121, 1
    %v123 = vadd.f32 %v121, %v122
    %v124 = vrot.slane %v117, 4
    %v125 = vadd.f32 %v117, %v124
    %v126 = vrot.slane %v125, 2
    %v127 = vadd.f32 %v125, %v126
    %v128 = vrot.slane %v127, 1
    %v129 = vadd.f32 %v127, %v128
    %130 = vadd.xlane.f32.xlu0 %v123
    %v131 = vpop.xlane.xlu0 %130
    %132 = vadd.xlane.f32.xlu0 %v129
    %v133 = vpop.xlane.xlu0 %132
    %vm134 = vcmp.gt.f32.partialorder %v131, %v64
    %vm135 = vcmp.gt.f32.partialorder %v133, %v64
    %v136 = vsel %vm134, %v112, %v106
    %v137 = vsel %vm135, %v113, %v107
    %v138 = vsel %vm134, %v108, %v112
    %v139 = vsel %vm135, %v109, %v113
    %v140 = vadd.f32 %v136, %v138
    %v141 = vadd.f32 %v137, %v139
    %v142 = vmul.f32 %v140, 0.5
    %v143 = vmul.f32 %v141, 0.5
    %v144 = vsub.f32 %v30, %v142
    %v145 = vsub.f32 %v31, %v143
    %v146 = vmax.f32 %v144, 0.0
    %v147 = vmax.f32 %v145, 0.0
    %v148 = vrot.slane %v146, 4
    %v149 = vadd.f32 %v146, %v148
    %v150 = vrot.slane %v149, 2
    %v151 = vadd.f32 %v149, %v150
    %v152 = vrot.slane %v151, 1
    %v153 = vadd.f32 %v151, %v152
    %v154 = vrot.slane %v147, 4
    %v155 = vadd.f32 %v147, %v154
    %v156 = vrot.slane %v155, 2
    %v157 = vadd.f32 %v155, %v156
    %v158 = vrot.slane %v157, 1
    %v159 = vadd.f32 %v157, %v158
    %160 = vadd.xlane.f32.xlu0 %v153
    %v161 = vpop.xlane.xlu0 %160
    %162 = vadd.xlane.f32.xlu0 %v159
    %v163 = vpop.xlane.xlu0 %162
    %vm164 = vcmp.gt.f32.partialorder %v161, %v64
    %vm165 = vcmp.gt.f32.partialorder %v163, %v64
    %v166 = vsel %vm164, %v142, %v136
    %v167 = vsel %vm165, %v143, %v137
    %v168 = vsel %vm164, %v138, %v142
    %v169 = vsel %vm165, %v139, %v143
    %v170 = vadd.f32 %v166, %v168
    %v171 = vadd.f32 %v167, %v169
    %v172 = vmul.f32 %v170, 0.5
    %v173 = vmul.f32 %v171, 0.5
    %v174 = vsub.f32 %v30, %v172
    %v175 = vsub.f32 %v31, %v173
    %v176 = vmax.f32 %v174, 0.0
    %v177 = vmax.f32 %v175, 0.0
    %v178 = vrot.slane %v176, 4
    %v179 = vadd.f32 %v176, %v178
    %v180 = vrot.slane %v179, 2
    %v181 = vadd.f32 %v179, %v180
    %v182 = vrot.slane %v181, 1
    %v183 = vadd.f32 %v181, %v182
    %v184 = vrot.slane %v177, 4
    %v185 = vadd.f32 %v177, %v184
    %v186 = vrot.slane %v185, 2
    %v187 = vadd.f32 %v185, %v186
    %v188 = vrot.slane %v187, 1
    %v189 = vadd.f32 %v187, %v188
    %190 = vadd.xlane.f32.xlu0 %v183
    %v191 = vpop.xlane.xlu0 %190
    %192 = vadd.xlane.f32.xlu0 %v189
    %v193 = vpop.xlane.xlu0 %192
    %vm194 = vcmp.gt.f32.partialorder %v191, %v64
    %vm195 = vcmp.gt.f32.partialorder %v193, %v64
    %v196 = vsel %vm194, %v172, %v166
    %v197 = vsel %vm195, %v173, %v167
    %v198 = vsel %vm194, %v168, %v172
    %v199 = vsel %vm195, %v169, %v173
    %v200 = vadd.f32 %v196, %v198
    %v201 = vadd.f32 %v197, %v199
    %v202 = vmul.f32 %v200, 0.5
    %v203 = vmul.f32 %v201, 0.5
    %v204 = vsub.f32 %v30, %v202
    %v205 = vsub.f32 %v31, %v203
    %v206 = vmax.f32 %v204, 0.0
    %v207 = vmax.f32 %v205, 0.0
    %v208 = vrot.slane %v206, 4
    %v209 = vadd.f32 %v206, %v208
    %v210 = vrot.slane %v209, 2
    %v211 = vadd.f32 %v209, %v210
    %v212 = vrot.slane %v211, 1
    %v213 = vadd.f32 %v211, %v212
    %v214 = vrot.slane %v207, 4
    %v215 = vadd.f32 %v207, %v214
    %v216 = vrot.slane %v215, 2
    %v217 = vadd.f32 %v215, %v216
    %v218 = vrot.slane %v217, 1
    %v219 = vadd.f32 %v217, %v218
    %220 = vadd.xlane.f32.xlu0 %v213
    %v221 = vpop.xlane.xlu0 %220
    %222 = vadd.xlane.f32.xlu0 %v219
    %v223 = vpop.xlane.xlu0 %222
    %vm224 = vcmp.gt.f32.partialorder %v221, %v64
    %vm225 = vcmp.gt.f32.partialorder %v223, %v64
    %v226 = vsel %vm224, %v202, %v196
    %v227 = vsel %vm225, %v203, %v197
    %v228 = vsel %vm224, %v198, %v202
    %v229 = vsel %vm225, %v199, %v203
    %v230 = vadd.f32 %v226, %v228
    %v231 = vadd.f32 %v227, %v229
    %v232 = vmul.f32 %v230, 0.5
    %v233 = vmul.f32 %v231, 0.5
    %v234 = vsub.f32 %v30, %v232
    %v235 = vsub.f32 %v31, %v233
    %v236 = vmax.f32 %v234, 0.0
    %v237 = vmax.f32 %v235, 0.0
    %v238 = vrot.slane %v236, 4
    %v239 = vadd.f32 %v236, %v238
    %v240 = vrot.slane %v239, 2
    %v241 = vadd.f32 %v239, %v240
    %v242 = vrot.slane %v241, 1
    %v243 = vadd.f32 %v241, %v242
    %v244 = vrot.slane %v237, 4
    %v245 = vadd.f32 %v237, %v244
    %v246 = vrot.slane %v245, 2
    %v247 = vadd.f32 %v245, %v246
    %v248 = vrot.slane %v247, 1
    %v249 = vadd.f32 %v247, %v248
    %250 = vadd.xlane.f32.xlu0 %v243
    %v251 = vpop.xlane.xlu0 %250
    %252 = vadd.xlane.f32.xlu0 %v249
    %v253 = vpop.xlane.xlu0 %252
    %vm254 = vcmp.gt.f32.partialorder %v251, %v64
    %vm255 = vcmp.gt.f32.partialorder %v253, %v64
    %v256 = vsel %vm254, %v232, %v226
    %v257 = vsel %vm255, %v233, %v227
    %v258 = vsel %vm254, %v228, %v232
    %v259 = vsel %vm255, %v229, %v233
    %v260 = vadd.f32 %v256, %v258
    %v261 = vadd.f32 %v257, %v259
    %v262 = vmul.f32 %v260, 0.5
    %v263 = vmul.f32 %v261, 0.5
    %v264 = vsub.f32 %v30, %v262
    %v265 = vsub.f32 %v31, %v263
    %v266 = vmax.f32 %v264, 0.0
    %v267 = vmax.f32 %v265, 0.0
    %v268 = vrot.slane %v266, 4
    %v269 = vadd.f32 %v266, %v268
    %v270 = vrot.slane %v269, 2
    %v271 = vadd.f32 %v269, %v270
    %v272 = vrot.slane %v271, 1
    %v273 = vadd.f32 %v271, %v272
    %v274 = vrot.slane %v267, 4
    %v275 = vadd.f32 %v267, %v274
    %v276 = vrot.slane %v275, 2
    %v277 = vadd.f32 %v275, %v276
    %v278 = vrot.slane %v277, 1
    %v279 = vadd.f32 %v277, %v278
    %280 = vadd.xlane.f32.xlu0 %v273
    %v281 = vpop.xlane.xlu0 %280
    %282 = vadd.xlane.f32.xlu0 %v279
    %v283 = vpop.xlane.xlu0 %282
    %vm284 = vcmp.gt.f32.partialorder %v281, %v64
    %vm285 = vcmp.gt.f32.partialorder %v283, %v64
    %v286 = vsel %vm284, %v262, %v256
    %v287 = vsel %vm285, %v263, %v257
    %v288 = vsel %vm284, %v258, %v262
    %v289 = vsel %vm285, %v259, %v263
    %v290 = vadd.f32 %v286, %v288
    %v291 = vadd.f32 %v287, %v289
    %v292 = vmul.f32 %v290, 0.5
    %v293 = vmul.f32 %v291, 0.5
    %v294 = vsub.f32 %v30, %v292
    %v295 = vsub.f32 %v31, %v293
    %v296 = vmax.f32 %v294, 0.0
    %v297 = vmax.f32 %v295, 0.0
    %v298 = vrot.slane %v296, 4
    %v299 = vadd.f32 %v296, %v298
    %v300 = vrot.slane %v299, 2
    %v301 = vadd.f32 %v299, %v300
    %v302 = vrot.slane %v301, 1
    %v303 = vadd.f32 %v301, %v302
    %v304 = vrot.slane %v297, 4
    %v305 = vadd.f32 %v297, %v304
    %v306 = vrot.slane %v305, 2
    %v307 = vadd.f32 %v305, %v306
    %v308 = vrot.slane %v307, 1
    %v309 = vadd.f32 %v307, %v308
    %310 = vadd.xlane.f32.xlu0 %v303
    %v311 = vpop.xlane.xlu0 %310
    %312 = vadd.xlane.f32.xlu0 %v309
    %v313 = vpop.xlane.xlu0 %312
    %vm314 = vcmp.gt.f32.partialorder %v311, %v64
    %vm315 = vcmp.gt.f32.partialorder %v313, %v64
    %v316 = vsel %vm314, %v292, %v286
    %v317 = vsel %vm315, %v293, %v287
    %v318 = vsel %vm314, %v288, %v292
    %v319 = vsel %vm315, %v289, %v293
    %v320 = vadd.f32 %v316, %v318
    %v321 = vadd.f32 %v317, %v319
    %v322 = vmul.f32 %v320, 0.5
    %v323 = vmul.f32 %v321, 0.5
    %v324 = vsub.f32 %v30, %v322
    %v325 = vsub.f32 %v31, %v323
    %v326 = vmax.f32 %v324, 0.0
    %v327 = vmax.f32 %v325, 0.0
    %v328 = vrot.slane %v326, 4
    %v329 = vadd.f32 %v326, %v328
    %v330 = vrot.slane %v329, 2
    %v331 = vadd.f32 %v329, %v330
    %v332 = vrot.slane %v331, 1
    %v333 = vadd.f32 %v331, %v332
    %v334 = vrot.slane %v327, 4
    %v335 = vadd.f32 %v327, %v334
    %v336 = vrot.slane %v335, 2
    %v337 = vadd.f32 %v335, %v336
    %v338 = vrot.slane %v337, 1
    %v339 = vadd.f32 %v337, %v338
    %340 = vadd.xlane.f32.xlu0 %v333
    %v341 = vpop.xlane.xlu0 %340
    %342 = vadd.xlane.f32.xlu0 %v339
    %v343 = vpop.xlane.xlu0 %342
    %vm344 = vcmp.gt.f32.partialorder %v341, %v64
    %vm345 = vcmp.gt.f32.partialorder %v343, %v64
    %v346 = vsel %vm344, %v322, %v316
    %v347 = vsel %vm345, %v323, %v317
    %v348 = vsel %vm344, %v318, %v322
    %v349 = vsel %vm345, %v319, %v323
    %v350 = vadd.f32 %v346, %v348
    %v351 = vadd.f32 %v347, %v349
    %v352 = vmul.f32 %v350, 0.5
    %v353 = vmul.f32 %v351, 0.5
    %v354 = vsub.f32 %v30, %v352
    %v355 = vsub.f32 %v31, %v353
    %v356 = vmax.f32 %v354, 0.0
    %v357 = vmax.f32 %v355, 0.0
    %v358 = vrot.slane %v356, 4
    %v359 = vadd.f32 %v356, %v358
    %v360 = vrot.slane %v359, 2
    %v361 = vadd.f32 %v359, %v360
    %v362 = vrot.slane %v361, 1
    %v363 = vadd.f32 %v361, %v362
    %v364 = vrot.slane %v357, 4
    %v365 = vadd.f32 %v357, %v364
    %v366 = vrot.slane %v365, 2
    %v367 = vadd.f32 %v365, %v366
    %v368 = vrot.slane %v367, 1
    %v369 = vadd.f32 %v367, %v368
    %370 = vadd.xlane.f32.xlu0 %v363
    %v371 = vpop.xlane.xlu0 %370
    %372 = vadd.xlane.f32.xlu0 %v369
    %v373 = vpop.xlane.xlu0 %372
    %vm374 = vcmp.gt.f32.partialorder %v371, %v64
    %vm375 = vcmp.gt.f32.partialorder %v373, %v64
    %v376 = vsel %vm374, %v352, %v346
    %v377 = vsel %vm375, %v353, %v347
    %v378 = vsel %vm374, %v348, %v352
    %v379 = vsel %vm375, %v349, %v353
    %v380 = vadd.f32 %v376, %v378
    %v381 = vadd.f32 %v377, %v379
    %v382 = vmul.f32 %v380, 0.5
    %v383 = vmul.f32 %v381, 0.5
    %v384 = vsub.f32 %v30, %v382
    %v385 = vsub.f32 %v31, %v383
    %v386 = vmax.f32 %v384, 0.0
    %v387 = vmax.f32 %v385, 0.0
    %v388 = vrot.slane %v386, 4
    %v389 = vadd.f32 %v386, %v388
    %v390 = vrot.slane %v389, 2
    %v391 = vadd.f32 %v389, %v390
    %v392 = vrot.slane %v391, 1
    %v393 = vadd.f32 %v391, %v392
    %v394 = vrot.slane %v387, 4
    %v395 = vadd.f32 %v387, %v394
    %v396 = vrot.slane %v395, 2
    %v397 = vadd.f32 %v395, %v396
    %v398 = vrot.slane %v397, 1
    %v399 = vadd.f32 %v397, %v398
    %400 = vadd.xlane.f32.xlu0 %v393
    %v401 = vpop.xlane.xlu0 %400
    %402 = vadd.xlane.f32.xlu0 %v399
    %v403 = vpop.xlane.xlu0 %402
    %vm404 = vcmp.gt.f32.partialorder %v401, %v64
    %vm405 = vcmp.gt.f32.partialorder %v403, %v64
    %v406 = vsel %vm404, %v382, %v376
    %v407 = vsel %vm405, %v383, %v377
    %v408 = vsel %vm404, %v378, %v382
    %v409 = vsel %vm405, %v379, %v383
    %v410 = vadd.f32 %v406, %v408
    %v411 = vadd.f32 %v407, %v409
    %v412 = vmul.f32 %v410, 0.5
    %v413 = vmul.f32 %v411, 0.5
    %v414 = vsub.f32 %v30, %v412
    %v415 = vsub.f32 %v31, %v413
    %v416 = vmax.f32 %v414, 0.0
    %v417 = vmax.f32 %v415, 0.0
    %v418 = vrot.slane %v416, 4
    %v419 = vadd.f32 %v416, %v418
    %v420 = vrot.slane %v419, 2
    %v421 = vadd.f32 %v419, %v420
    %v422 = vrot.slane %v421, 1
    %v423 = vadd.f32 %v421, %v422
    %v424 = vrot.slane %v417, 4
    %v425 = vadd.f32 %v417, %v424
    %v426 = vrot.slane %v425, 2
    %v427 = vadd.f32 %v425, %v426
    %v428 = vrot.slane %v427, 1
    %v429 = vadd.f32 %v427, %v428
    %430 = vadd.xlane.f32.xlu0 %v423
    %v431 = vpop.xlane.xlu0 %430
    %432 = vadd.xlane.f32.xlu0 %v429
    %v433 = vpop.xlane.xlu0 %432
    %vm434 = vcmp.gt.f32.partialorder %v431, %v64
    %vm435 = vcmp.gt.f32.partialorder %v433, %v64
    %v436 = vsel %vm434, %v412, %v406
    %v437 = vsel %vm435, %v413, %v407
    %v438 = vsel %vm434, %v408, %v412
    %v439 = vsel %vm435, %v409, %v413
    %v440 = vadd.f32 %v436, %v438
    %v441 = vadd.f32 %v437, %v439
    %v442 = vmul.f32 %v440, 0.5
    %v443 = vmul.f32 %v441, 0.5
    %v444 = vsub.f32 %v30, %v442
    %v445 = vsub.f32 %v31, %v443
    %v446 = vmax.f32 %v444, 0.0
    %v447 = vmax.f32 %v445, 0.0
    %v448 = vrot.slane %v446, 4
    %v449 = vadd.f32 %v446, %v448
    %v450 = vrot.slane %v449, 2
    %v451 = vadd.f32 %v449, %v450
    %v452 = vrot.slane %v451, 1
    %v453 = vadd.f32 %v451, %v452
    %v454 = vrot.slane %v447, 4
    %v455 = vadd.f32 %v447, %v454
    %v456 = vrot.slane %v455, 2
    %v457 = vadd.f32 %v455, %v456
    %v458 = vrot.slane %v457, 1
    %v459 = vadd.f32 %v457, %v458
    %460 = vadd.xlane.f32.xlu0 %v453
    %v461 = vpop.xlane.xlu0 %460
    %462 = vadd.xlane.f32.xlu0 %v459
    %v463 = vpop.xlane.xlu0 %462
    %vm464 = vcmp.gt.f32.partialorder %v461, %v64
    %vm465 = vcmp.gt.f32.partialorder %v463, %v64
    %v466 = vsel %vm464, %v442, %v436
    %v467 = vsel %vm465, %v443, %v437
    %v468 = vsel %vm464, %v438, %v442
    %v469 = vsel %vm465, %v439, %v443
    %v470 = vadd.f32 %v466, %v468
    %v471 = vadd.f32 %v467, %v469
    %v472 = vmul.f32 %v470, 0.5
    %v473 = vmul.f32 %v471, 0.5
    %v474 = vsub.f32 %v30, %v472
    %v475 = vsub.f32 %v31, %v473
    %v476 = vmax.f32 %v474, 0.0
    %v477 = vmax.f32 %v475, 0.0
    %v478 = vrot.slane %v476, 4
    %v479 = vadd.f32 %v476, %v478
    %v480 = vrot.slane %v479, 2
    %v481 = vadd.f32 %v479, %v480
    %v482 = vrot.slane %v481, 1
    %v483 = vadd.f32 %v481, %v482
    %v484 = vrot.slane %v477, 4
    %v485 = vadd.f32 %v477, %v484
    %v486 = vrot.slane %v485, 2
    %v487 = vadd.f32 %v485, %v486
    %v488 = vrot.slane %v487, 1
    %v489 = vadd.f32 %v487, %v488
    %490 = vadd.xlane.f32.xlu0 %v483
    %v491 = vpop.xlane.xlu0 %490
    %492 = vadd.xlane.f32.xlu0 %v489
    %v493 = vpop.xlane.xlu0 %492
    %vm494 = vcmp.gt.f32.partialorder %v491, %v64
    %vm495 = vcmp.gt.f32.partialorder %v493, %v64
    %v496 = vsel %vm494, %v472, %v466
    %v497 = vsel %vm495, %v473, %v467
    %v498 = vsel %vm494, %v468, %v472
    %v499 = vsel %vm495, %v469, %v473
    %v500 = vadd.f32 %v496, %v498
    %v501 = vadd.f32 %v497, %v499
    %v502 = vmul.f32 %v500, 0.5
    %v503 = vmul.f32 %v501, 0.5
    %v504 = vsub.f32 %v30, %v502
    %v505 = vsub.f32 %v31, %v503
    %v506 = vmax.f32 %v504, 0.0
    %v507 = vmax.f32 %v505, 0.0
    %v508 = vrot.slane %v506, 4
    %v509 = vadd.f32 %v506, %v508
    %v510 = vrot.slane %v509, 2
    %v511 = vadd.f32 %v509, %v510
    %v512 = vrot.slane %v511, 1
    %v513 = vadd.f32 %v511, %v512
    %v514 = vrot.slane %v507, 4
    %v515 = vadd.f32 %v507, %v514
    %v516 = vrot.slane %v515, 2
    %v517 = vadd.f32 %v515, %v516
    %v518 = vrot.slane %v517, 1
    %v519 = vadd.f32 %v517, %v518
    %520 = vadd.xlane.f32.xlu0 %v513
    %v521 = vpop.xlane.xlu0 %520
    %522 = vadd.xlane.f32.xlu0 %v519
    %v523 = vpop.xlane.xlu0 %522
    %vm524 = vcmp.gt.f32.partialorder %v521, %v64
    %vm525 = vcmp.gt.f32.partialorder %v523, %v64
    %v526 = vsel %vm524, %v502, %v496
    %v527 = vsel %vm525, %v503, %v497
    %v528 = vsel %vm524, %v498, %v502
    %v529 = vsel %vm525, %v499, %v503
    %v530 = vadd.f32 %v526, %v528
    %v531 = vadd.f32 %v527, %v529
    %v532 = vmul.f32 %v530, 0.5
    %v533 = vmul.f32 %v531, 0.5
    %v534 = vsub.f32 %v30, %v532
    %v535 = vsub.f32 %v31, %v533
    %v536 = vmax.f32 %v534, 0.0
    %v537 = vmax.f32 %v535, 0.0
    %v538 = vrot.slane %v536, 4
    %v539 = vadd.f32 %v536, %v538
    %v540 = vrot.slane %v539, 2
    %v541 = vadd.f32 %v539, %v540
    %v542 = vrot.slane %v541, 1
    %v543 = vadd.f32 %v541, %v542
    %v544 = vrot.slane %v537, 4
    %v545 = vadd.f32 %v537, %v544
    %v546 = vrot.slane %v545, 2
    %v547 = vadd.f32 %v545, %v546
    %v548 = vrot.slane %v547, 1
    %v549 = vadd.f32 %v547, %v548
    %550 = vadd.xlane.f32.xlu0 %v543
    %v551 = vpop.xlane.xlu0 %550
    %552 = vadd.xlane.f32.xlu0 %v549
    %v553 = vpop.xlane.xlu0 %552
    %vm554 = vcmp.gt.f32.partialorder %v551, %v64
    %vm555 = vcmp.gt.f32.partialorder %v553, %v64
    %v556 = vsel %vm554, %v532, %v526
    %v557 = vsel %vm555, %v533, %v527
    %v558 = vsel %vm554, %v528, %v532
    %v559 = vsel %vm555, %v529, %v533
    %v560 = vadd.f32 %v556, %v558
    %v561 = vadd.f32 %v557, %v559
    %v562 = vmul.f32 %v560, 0.5
    %v563 = vmul.f32 %v561, 0.5
    %v564 = vsub.f32 %v30, %v562
    %v565 = vsub.f32 %v31, %v563
    %v566 = vmax.f32 %v564, 0.0
    %v567 = vmax.f32 %v565, 0.0
    %v568 = vrot.slane %v566, 4
    %v569 = vadd.f32 %v566, %v568
    %v570 = vrot.slane %v569, 2
    %v571 = vadd.f32 %v569, %v570
    %v572 = vrot.slane %v571, 1
    %v573 = vadd.f32 %v571, %v572
    %v574 = vrot.slane %v567, 4
    %v575 = vadd.f32 %v567, %v574
    %v576 = vrot.slane %v575, 2
    %v577 = vadd.f32 %v575, %v576
    %v578 = vrot.slane %v577, 1
    %v579 = vadd.f32 %v577, %v578
    %580 = vadd.xlane.f32.xlu0 %v573
    %v581 = vpop.xlane.xlu0 %580
    %582 = vadd.xlane.f32.xlu0 %v579
    %v583 = vpop.xlane.xlu0 %582
    %vm584 = vcmp.gt.f32.partialorder %v581, %v64
    %vm585 = vcmp.gt.f32.partialorder %v583, %v64
    %v586 = vsel %vm584, %v562, %v556
    %v587 = vsel %vm585, %v563, %v557
    %v588 = vsel %vm584, %v558, %v562
    %v589 = vsel %vm585, %v559, %v563
    %v590 = vadd.f32 %v586, %v588
    %v591 = vadd.f32 %v587, %v589
    %v592 = vmul.f32 %v590, 0.5
    %v593 = vmul.f32 %v591, 0.5
    %v594 = vsub.f32 %v30, %v592
    %v595 = vsub.f32 %v31, %v593
    %v596 = vmax.f32 %v594, 0.0
    %v597 = vmax.f32 %v595, 0.0
    %v598 = vrot.slane %v596, 4
    %v599 = vadd.f32 %v596, %v598
    %v600 = vrot.slane %v599, 2
    %v601 = vadd.f32 %v599, %v600
    %v602 = vrot.slane %v601, 1
    %v603 = vadd.f32 %v601, %v602
    %v604 = vrot.slane %v597, 4
    %v605 = vadd.f32 %v597, %v604
    %v606 = vrot.slane %v605, 2
    %v607 = vadd.f32 %v605, %v606
    %v608 = vrot.slane %v607, 1
    %v609 = vadd.f32 %v607, %v608
    %610 = vadd.xlane.f32.xlu0 %v603
    %v611 = vpop.xlane.xlu0 %610
    %612 = vadd.xlane.f32.xlu0 %v609
    %v613 = vpop.xlane.xlu0 %612
    %vm614 = vcmp.gt.f32.partialorder %v611, %v64
    %vm615 = vcmp.gt.f32.partialorder %v613, %v64
    %v616 = vsel %vm614, %v592, %v586
    %v617 = vsel %vm615, %v593, %v587
    %v618 = vsel %vm614, %v588, %v592
    %v619 = vsel %vm615, %v589, %v593
    %v620 = vadd.f32 %v616, %v618
    %v621 = vadd.f32 %v617, %v619
    %v622 = vmul.f32 %v620, 0.5
    %v623 = vmul.f32 %v621, 0.5
    %v624 = vsub.f32 %v30, %v622
    %v625 = vsub.f32 %v31, %v623
    %v626 = vmax.f32 %v624, 0.0
    %v627 = vmax.f32 %v625, 0.0
    %v628 = vrot.slane %v626, 4
    %v629 = vadd.f32 %v626, %v628
    %v630 = vrot.slane %v629, 2
    %v631 = vadd.f32 %v629, %v630
    %v632 = vrot.slane %v631, 1
    %v633 = vadd.f32 %v631, %v632
    %v634 = vrot.slane %v627, 4
    %v635 = vadd.f32 %v627, %v634
    %v636 = vrot.slane %v635, 2
    %v637 = vadd.f32 %v635, %v636
    %v638 = vrot.slane %v637, 1
    %v639 = vadd.f32 %v637, %v638
    %640 = vadd.xlane.f32.xlu0 %v633
    %v641 = vpop.xlane.xlu0 %640
    %642 = vadd.xlane.f32.xlu0 %v639
    %v643 = vpop.xlane.xlu0 %642
    %vm644 = vcmp.gt.f32.partialorder %v641, %v64
    %vm645 = vcmp.gt.f32.partialorder %v643, %v64
    %v646 = vsel %vm644, %v622, %v616
    %v647 = vsel %vm645, %v623, %v617
    %v648 = vsel %vm644, %v618, %v622
    %v649 = vsel %vm645, %v619, %v623
    %v650 = vadd.f32 %v646, %v648
    %v651 = vadd.f32 %v647, %v649
    %v652 = vmul.f32 %v650, 0.5
    %v653 = vmul.f32 %v651, 0.5
    %v654 = vsub.f32 %v30, %v652
    %v655 = vsub.f32 %v31, %v653
    %v656 = vmax.f32 %v654, 0.0
    %v657 = vmax.f32 %v655, 0.0
    %v658 = vrot.slane %v656, 4
    %v659 = vadd.f32 %v656, %v658
    %v660 = vrot.slane %v659, 2
    %v661 = vadd.f32 %v659, %v660
    %v662 = vrot.slane %v661, 1
    %v663 = vadd.f32 %v661, %v662
    %v664 = vrot.slane %v657, 4
    %v665 = vadd.f32 %v657, %v664
    %v666 = vrot.slane %v665, 2
    %v667 = vadd.f32 %v665, %v666
    %v668 = vrot.slane %v667, 1
    %v669 = vadd.f32 %v667, %v668
    %670 = vadd.xlane.f32.xlu0 %v663
    %v671 = vpop.xlane.xlu0 %670
    %672 = vadd.xlane.f32.xlu0 %v669
    %v673 = vpop.xlane.xlu0 %672
    %vm674 = vcmp.gt.f32.partialorder %v671, %v64
    %vm675 = vcmp.gt.f32.partialorder %v673, %v64
    %v676 = vsel %vm674, %v652, %v646
    %v677 = vsel %vm675, %v653, %v647
    %v678 = vsel %vm674, %v648, %v652
    %v679 = vsel %vm675, %v649, %v653
    %v680 = vadd.f32 %v676, %v678
    %v681 = vadd.f32 %v677, %v679
    %v682 = vmul.f32 %v680, 0.5
    %v683 = vmul.f32 %v681, 0.5
    %v684 = vsub.f32 %v30, %v682
    %v685 = vsub.f32 %v31, %v683
    %v686 = vmax.f32 %v684, 0.0
    %v687 = vmax.f32 %v685, 0.0
    %v688 = vrot.slane %v686, 4
    %v689 = vadd.f32 %v686, %v688
    %v690 = vrot.slane %v689, 2
    %v691 = vadd.f32 %v689, %v690
    %v692 = vrot.slane %v691, 1
    %v693 = vadd.f32 %v691, %v692
    %v694 = vrot.slane %v687, 4
    %v695 = vadd.f32 %v687, %v694
    %v696 = vrot.slane %v695, 2
    %v697 = vadd.f32 %v695, %v696
    %v698 = vrot.slane %v697, 1
    %v699 = vadd.f32 %v697, %v698
    %700 = vadd.xlane.f32.xlu0 %v693
    %v701 = vpop.xlane.xlu0 %700
    %702 = vadd.xlane.f32.xlu0 %v699
    %v703 = vpop.xlane.xlu0 %702
    %vm704 = vcmp.gt.f32.partialorder %v701, %v64
    %vm705 = vcmp.gt.f32.partialorder %v703, %v64
    %v706 = vsel %vm704, %v682, %v676
    %v707 = vsel %vm705, %v683, %v677
    %v708 = vsel %vm704, %v678, %v682
    %v709 = vsel %vm705, %v679, %v683
    %v710 = vadd.f32 %v706, %v708
    %v711 = vadd.f32 %v707, %v709
    %v712 = vmul.f32 %v710, 0.5
    %v713 = vmul.f32 %v711, 0.5
    %v714 = vsub.f32 %v30, %v712
    %v715 = vsub.f32 %v31, %v713
    %v716 = vmax.f32 %v714, 0.0
    %v717 = vmax.f32 %v715, 0.0
    %v718 = vrot.slane %v716, 4
    %v719 = vadd.f32 %v716, %v718
    %v720 = vrot.slane %v719, 2
    %v721 = vadd.f32 %v719, %v720
    %v722 = vrot.slane %v721, 1
    %v723 = vadd.f32 %v721, %v722
    %v724 = vrot.slane %v717, 4
    %v725 = vadd.f32 %v717, %v724
    %v726 = vrot.slane %v725, 2
    %v727 = vadd.f32 %v725, %v726
    %v728 = vrot.slane %v727, 1
    %v729 = vadd.f32 %v727, %v728
    %730 = vadd.xlane.f32.xlu0 %v723
    %v731 = vpop.xlane.xlu0 %730
    %732 = vadd.xlane.f32.xlu0 %v729
    %v733 = vpop.xlane.xlu0 %732
    %vm734 = vcmp.gt.f32.partialorder %v731, %v64
    %vm735 = vcmp.gt.f32.partialorder %v733, %v64
    %v736 = vsel %vm734, %v712, %v706
    %v737 = vsel %vm735, %v713, %v707
    %v738 = vsel %vm734, %v708, %v712
    %v739 = vsel %vm735, %v709, %v713
    %v740 = vadd.f32 %v736, %v738
    %v741 = vadd.f32 %v737, %v739
    %v742 = vmul.f32 %v740, 0.5
    %v743 = vmul.f32 %v741, 0.5
    %v744 = vsub.f32 %v30, %v742
    %v745 = vsub.f32 %v31, %v743
    %v746 = vmax.f32 %v744, 0.0
    %v747 = vmax.f32 %v745, 0.0
    %v748 = vrot.slane %v746, 4
    %v749 = vadd.f32 %v746, %v748
    %v750 = vrot.slane %v749, 2
    %v751 = vadd.f32 %v749, %v750
    %v752 = vrot.slane %v751, 1
    %v753 = vadd.f32 %v751, %v752
    %v754 = vrot.slane %v747, 4
    %v755 = vadd.f32 %v747, %v754
    %v756 = vrot.slane %v755, 2
    %v757 = vadd.f32 %v755, %v756
    %v758 = vrot.slane %v757, 1
    %v759 = vadd.f32 %v757, %v758
    %760 = vadd.xlane.f32.xlu0 %v753
    %v761 = vpop.xlane.xlu0 %760
    %762 = vadd.xlane.f32.xlu0 %v759
    %v763 = vpop.xlane.xlu0 %762
    %vm764 = vcmp.gt.f32.partialorder %v761, %v64
    %vm765 = vcmp.gt.f32.partialorder %v763, %v64
    %v766 = vsel %vm764, %v742, %v736
    %v767 = vsel %vm765, %v743, %v737
    %v768 = vsel %vm764, %v738, %v742
    %v769 = vsel %vm765, %v739, %v743
    %v770 = vadd.f32 %v766, %v768
    %v771 = vadd.f32 %v767, %v769
    %v772 = vmul.f32 %v770, 0.5
    %v773 = vmul.f32 %v771, 0.5
    %v774 = vsub.f32 %v30, %v772
    %v775 = vsub.f32 %v31, %v773
    %v776 = vmax.f32 %v774, 0.0
    %v777 = vmax.f32 %v775, 0.0
    %v778 = vrot.slane %v776, 4
    %v779 = vadd.f32 %v776, %v778
    %v780 = vrot.slane %v779, 2
    %v781 = vadd.f32 %v779, %v780
    %v782 = vrot.slane %v781, 1
    %v783 = vadd.f32 %v781, %v782
    %v784 = vrot.slane %v777, 4
    %v785 = vadd.f32 %v777, %v784
    %v786 = vrot.slane %v785, 2
    %v787 = vadd.f32 %v785, %v786
    %v788 = vrot.slane %v787, 1
    %v789 = vadd.f32 %v787, %v788
    %790 = vadd.xlane.f32.xlu0 %v783
    %v791 = vpop.xlane.xlu0 %790
    %792 = vadd.xlane.f32.xlu0 %v789
    %v793 = vpop.xlane.xlu0 %792
    %vm794 = vcmp.gt.f32.partialorder %v791, %v64
    %vm795 = vcmp.gt.f32.partialorder %v793, %v64
    %v796 = vsel %vm794, %v772, %v766
    %v797 = vsel %vm795, %v773, %v767
    %v798 = vsel %vm794, %v768, %v772
    %v799 = vsel %vm795, %v769, %v773
    %v800 = vadd.f32 %v796, %v798
    %v801 = vadd.f32 %v797, %v799
    %v802 = vmul.f32 %v800, 0.5
    %v803 = vmul.f32 %v801, 0.5
    %vm804 = vcmp.le.f32.partialorder %v45, %v64
    %vm805 = vcmp.le.f32.partialorder %v47, %v64
    %v806 = vsel %vm804, 0.0, %v802
    %v807 = vsel %vm805, 0.0, %v803
    %v808 = vsub.f32 %v30, %v806
    %v809 = vsub.f32 %v31, %v807
    %v810 = vmax.f32 %v808, 0.0
    %v811 = vmax.f32 %v809, 0.0
    %vm812 = vcmp.lt.f32.partialorder %v28, 0.0
    %vm813 = vcmp.lt.f32.partialorder %v29, 0.0
    %v814 = vsub.f32 0.0, %v810
    %v815 = vsub.f32 0.0, %v811
    %v816 = vsel %vm812, %v814, %v810
    %v817 = vsel %vm813, %v815, %v811
    %818 = vst [vmem:[#allocation6] sm:$0xff] %v816
    %819 = vst [vmem:[#allocation6 + $0x8] sm:$0xff] %v817
    // Predicated region
    $region14: #{tpu_custom_call.1} parent=1 // pred_check
      _
    $region15: #{tpu_custom_call.1} parent=1 // pred_check_branch
      %821 = sbr.rel (0) target = $region17
    $region16: #{tpu_custom_call.1} parent=1 // pred_region
      %s823 = ssub.s32 256, 256
      %824 = vsyncadd [#allocation5], %s823
      %s825 = sshll.u32 [#allocation6], 4
      %s826 = int_to_ptr.vmem [resolvable:$true] %s825
      %831 = dma.vmem_to_hbm [thread:$0]  %s826, 256, %s2, [#allocation5], 128, 128, 8
    $region17: #{tpu_custom_call.1} parent=1 // pred_fallthru
      _
    // Predicated region
    $region18: #{tpu_custom_call.1} parent=1 // pred_check
      _
    $region19: #{tpu_custom_call.1} parent=1 // pred_check_branch
      %833 = sbr.rel (0) target = $region21
    $region20: #{tpu_custom_call.1} parent=1 // pred_region
      %834 = dma.done [#allocation5], 256
    $region21: #{tpu_custom_call.1} parent=1 // pred_fallthru
      _
    %835 = vsyncpa [#allocation4], 1
    %836 = vsyncpa [#allocation5], 1

</llo_original>
